<compile_context>
chip_gen: v6e
topology: v6e:2x2x1
jax: 0.10.0
libtpu: 0.0.40
codegen_flags: <defaults>
</compile_context>

<pallas_src>
import functools
import math

import jax
import jax.numpy as jnp
from jax.experimental import pallas as pl
from jax.experimental.pallas import tpu as pltpu


# ----------------------------------------------------------------------------
# Fused 5-layer causal-conv kernel (all activations stay VMEM resident).
# ----------------------------------------------------------------------------
def _postnet_kernel(x_ref, w1_ref, wm_ref, w2_ref, s1_ref, sm_ref, s2_ref,
                    o_ref, h_a, h_b, *, K, tile_l, n_mid):
    # x_ref:  (1, 1, tile_l + halo, num_mels)  bf16 causal input window (auto-pipelined)
    # w1_ref: (K*num_mels, H)  bf16  im2col-flattened layer-1 weights (BN scale folded in)
    # wm_ref: (n_mid, K, H, H) bf16  middle-layer weights
    # w2_ref: (K, H, C)        bf16  final projection weights
    # s*_ref: f32 per-output-channel shifts (folded BN shift + conv bias)
    # o_ref:  (1, tile_l, C)   output tile (lane-dense)
    # h_a/h_b:(tile_l + 4*(K-1), H) bf16 ping-pong scratch for hidden activations
    halo_per = K - 1
    n_layers = n_mid + 2
    li = pl.program_id(1)          # L-tile index; tile 0 owns the causal zero history

    def zero_neg_time_rows(h, zero_rows):
        # On the first L-tile, rows recomputed for t < 0 must be exactly zero (the reference
        # conv zero-padding feeds zeros into the next layer), not tanh(shift).
        row = jax.lax.broadcasted_iota(jnp.int32, (h.shape[0], 1), 0)
        return jnp.where((li > 0) | (row >= zero_rows), h, 0.0)

    # ---- layer 1: im2col over the K causal taps -> one deep MXU matmul ----
    cur = tile_l + (n_layers - 1) * halo_per
    x = x_ref[0, 0]                                              # (tile_l + halo, num_mels)
    x_cat = jnp.concatenate([x[k:k + cur, :] for k in range(K)], axis=1)
    h = jnp.tanh(jnp.dot(x_cat, w1_ref[...], preferred_element_type=jnp.float32)
                 + s1_ref[...])
    h = zero_neg_time_rows(h, (n_layers - 1) * halo_per)
    h_a[0:cur, :] = h.astype(h_a.dtype)

    # ---- middle layers: ping-pong between the two VMEM scratch buffers ----
    src, dst = h_a, h_b
    for i in range(n_mid):
        cur -= halo_per
        acc = jnp.dot(src[0:cur, :], wm_ref[i, 0], preferred_element_type=jnp.float32)
        for k in range(1, K):
            acc = acc + jnp.dot(src[k:k + cur, :], wm_ref[i, k],
                                preferred_element_type=jnp.float32)
        h = jnp.tanh(acc + sm_ref[i:i + 1, :])
        h = zero_neg_time_rows(h, (n_layers - (i + 2)) * halo_per)
        dst[0:cur, :] = h.astype(dst.dtype)
        src, dst = dst, src

    # ---- final projection (no BN, no activation) -> lane-dense output tile ----
    acc = jnp.dot(src[0:tile_l, :], w2_ref[0], preferred_element_type=jnp.float32)
    for k in range(1, K):
        acc = acc + jnp.dot(src[k:k + tile_l, :], w2_ref[k],
                            preferred_element_type=jnp.float32)
    o_ref[0] = (acc + s2_ref[...]).astype(o_ref.dtype)


# ----------------------------------------------------------------------------
# Wrapper: BN folding, bf16 weight prep, L tiling, windowing, pallas_call.
# ----------------------------------------------------------------------------
def _round_up(n, m):
    return ((n + m - 1) // m) * m


def _fold_bn(w, b, bn, eps=1e-5):
    """Fold eval-mode BatchNorm1d into the conv weights and a per-channel shift."""
    scale = bn["gamma"] * jax.lax.rsqrt(bn["var"] + eps)
    return w * scale[None, None, :], (b - bn["mean"]) * scale + bn["beta"]


def _pad_last2(w, cin_t, cout_t):
    K, cin, cout = w.shape
    return jnp.pad(w, ((0, 0), (0, cin_t - cin), (0, cout_t - cout)))


def speech_postnet_forward(params, x, tile_l=1024):
    """x: [B, L, num_mels] -> [B, L, num_mels]  (eval-mode SpeechPostnet.forward)."""
    orig_dtype = x.dtype
    B, L, num_mels = x.shape
    K, _, num_hidden = params["conv1_w"].shape
    n_mid = len(params["convs_w"])
    n_layers = n_mid + 2
    halo = n_layers * (K - 1)
    compute_dtype = jnp.bfloat16

    # Channel-padding targets: hidden width only gets 128-lane padding when already >= 128
    # (real postnets use 256/512); tiny demo configs are not inflated 16x.  Output width is
    # padded to 128 lanes so the final stores are lane-dense.
    H = _round_up(num_hidden, 128) if num_hidden >= 128 else _round_up(num_hidden, 8)
    C = _round_up(num_mels, 128)

    # Fold eval-mode BN + conv bias into bf16 weights and f32 per-channel shifts (trace time).
    w1, s1 = _fold_bn(params["conv1_w"], params["conv1_b"], params["bn"][0])
    w1 = _pad_last2(w1, num_mels, H).reshape(K * num_mels, H).astype(compute_dtype)
    s1 = jnp.pad(s1, (0, H - num_hidden)).reshape(1, H).astype(jnp.float32)

    wm, sm = [], []
    for i in range(n_mid):
        w, s = _fold_bn(params["convs_w"][i], params["convs_b"][i], params["bn"][1 + i])
        wm.append(_pad_last2(w, H, H))
        sm.append(jnp.pad(s, (0, H - num_hidden)))
    wm = jnp.stack(wm, axis=0).astype(compute_dtype)                  # (n_mid, K, H, H)
    sm = jnp.stack(sm, axis=0).astype(jnp.float32)                    # (n_mid, H)

    w2 = _pad_last2(params["conv2_w"], H, C).astype(compute_dtype)    # (K, H, C)
    s2 = jnp.pad(params["conv2_b"], (0, C - num_mels)).reshape(1, C).astype(jnp.float32)

    # L-tile selection: multiple of 8, and >= halo whenever more than one tile so that only
    # tile 0 ever recomputes t < 0 rows (which the kernel zero-masks).
    halo8 = _round_up(halo, 8)
    if L <= tile_l:
        tl = max(_round_up(L, 8), 8)
    else:
        tl = max(_round_up(tile_l, 8), halo8)
    if B == 1 and L > 2 * max(halo, 8):        # v7x: give both TensorCores an L-tile
        tl = min(tl, max(_round_up((L + 1) // 2, 8), halo8))
    L_pad = _round_up(L, tl)
    nlt = L_pad // tl
    win = tl + halo
    hid_rows = tl + (n_layers - 1) * (K - 1)

    # Build overlapping causal windows once in XLA (bf16 halves the staging bytes); Pallas'
    # standard pipeline then double-buffers/prefetches each window like any other input block,
    # hiding the HBM->VMEM staging behind the previous tile's compute.
    x_pad = jnp.pad(x.astype(compute_dtype), ((0, 0), (halo, L_pad - L), (0, 0)))
    x_win = jnp.stack([x_pad[:, i * tl:i * tl + win, :] for i in range(nlt)], axis=1)

    # Scoped-VMEM budget (double-buffered input/output/weights + hidden scratch) -> explicit
    # limit so large configs don't trip the 16/32 MiB defaults.
    def nbytes(shape, dtype):
        return math.prod(shape) * jnp.dtype(dtype).itemsize

    vmem_bytes = (
        2 * nbytes((1, 1, win, num_mels), compute_dtype)
        + 2 * (nbytes(w1.shape, compute_dtype) + nbytes(wm.shape, compute_dtype)
               + nbytes(w2.shape, compute_dtype)
               + nbytes(s1.shape, jnp.float32) + nbytes(sm.shape, jnp.float32)
               + nbytes(s2.shape, jnp.float32))
        + 2 * nbytes((1, tl, C), orig_dtype)
        + 2 * nbytes((hid_rows, H), compute_dtype))
    vmem_limit = int(min(100 * 2 ** 20, max(32 * 2 ** 20, 2 * vmem_bytes)))

    kernel = functools.partial(_postnet_kernel, K=K, tile_l=tl, n_mid=n_mid)

    out = pl.pallas_call(
        kernel,
        out_shape=jax.ShapeDtypeStruct((B, L_pad, C), orig_dtype),
        grid_spec=pltpu.PrefetchScalarGridSpec(
            num_scalar_prefetch=0,
            grid=(B, nlt),
            in_specs=[
                pl.BlockSpec((1, 1, win, num_mels), lambda b, l: (b, l, 0, 0)),
                pl.BlockSpec((K * num_mels, H), lambda b, l: (0, 0)),        # VMEM resident
                pl.BlockSpec((n_mid, K, H, H), lambda b, l: (0, 0, 0, 0)),
                pl.BlockSpec((K, H, C), lambda b, l: (0, 0, 0)),
                pl.BlockSpec((1, H), lambda b, l: (0, 0)),
                pl.BlockSpec((n_mid, H), lambda b, l: (0, 0)),
                pl.BlockSpec((1, C), lambda b, l: (0, 0)),
            ],
            out_specs=pl.BlockSpec((1, tl, C), lambda b, l: (b, l, 0)),
            scratch_shapes=[
                pltpu.VMEM((hid_rows, H), compute_dtype),    # hidden ping
                pltpu.VMEM((hid_rows, H), compute_dtype),    # hidden pong
            ],
        ),
        compiler_params=pltpu.CompilerParams(
            dimension_semantics=("parallel", "parallel"),
            vmem_limit_bytes=vmem_limit),
    )(x_win, w1, wm, w2, s1, sm, s2)

    return out[:, :L, :num_mels].astype(orig_dtype)


# ----------------------------------------------------------------------------
# Deterministic parameter construction (mirrors the PyTorch __init__ shapes).
# ----------------------------------------------------------------------------
def _xavier_uniform(key, k, cin, cout, gain):
    bound = gain * (6.0 / (cin * k + cout * k)) ** 0.5
    return jax.random.uniform(key, (k, cin, cout), jnp.float32, -bound, bound)


def _conv_bias(key, cin, k, cout):
    bound = 1.0 / (cin * k) ** 0.5
    return jax.random.uniform(key, (cout,), jnp.float32, -bound, bound)


def init_speech_postnet_params(key, num_mels, num_hidden, kernel_size=5):
    tanh_gain = 5.0 / 3.0  # nn.init.calculate_gain('tanh')
    keys = jax.random.split(key, 16)
    params = {}
    params["conv1_w"] = _xavier_uniform(keys[0], kernel_size, num_mels, num_hidden, tanh_gain)
    params["conv1_b"] = _conv_bias(keys[1], num_mels, kernel_size, num_hidden)
    params["convs_w"] = [
        _xavier_uniform(keys[2 + i], kernel_size, num_hidden, num_hidden, tanh_gain)
        for i in range(3)
    ]
    params["convs_b"] = [
        _conv_bias(keys[5 + i], num_hidden, kernel_size, num_hidden) for i in range(3)
    ]
    params["conv2_w"] = _xavier_uniform(keys[8], kernel_size, num_hidden, num_mels, 1.0)
    params["conv2_b"] = _conv_bias(keys[9], num_hidden, kernel_size, num_mels)
    bn = {
        "gamma": jnp.ones((num_hidden,), jnp.float32),
        "beta": jnp.zeros((num_hidden,), jnp.float32),
        "mean": jnp.zeros((num_hidden,), jnp.float32),
        "var": jnp.ones((num_hidden,), jnp.float32),
    }
    params["bn"] = [dict(bn) for _ in range(4)]  # index 0 = pre_batchnorm
    return params


# ----------------------------------------------------------------------------
# Pure-JAX reference (eval mode), for correctness checking only.
# ----------------------------------------------------------------------------
def speech_postnet_reference(params, x, eps=1e-5):
    def causal_conv(h, w, b):
        Kk = w.shape[0]
        Ll = h.shape[1]
        hp = jnp.pad(h, ((0, 0), (Kk - 1, 0), (0, 0)))
        y = jnp.zeros(h.shape[:2] + (w.shape[-1],), jnp.float32) + b
        for k in range(Kk):
            y = y + jnp.einsum("blc,cd->bld", hp[:, k:k + Ll, :], w[k])
        return y

    def bn(y, p):
        return (y - p["mean"]) * (p["gamma"] * jax.lax.rsqrt(p["var"] + eps)) + p["beta"]

    h = jnp.tanh(bn(causal_conv(x, params["conv1_w"], params["conv1_b"]), params["bn"][0]))
    for i in range(len(params["convs_w"])):
        h = jnp.tanh(bn(causal_conv(h, params["convs_w"][i], params["convs_b"][i]),
                        params["bn"][1 + i]))
    return causal_conv(h, params["conv2_w"], params["conv2_b"])


if __name__ == "__main__":
    num_mels = 8
    num_hidden = 32
    batch = 2
    length = 16

    key = jax.random.PRNGKey(0)
    pkey, xkey, x2key = jax.random.split(key, 3)
    params = init_speech_postnet_params(pkey, num_mels, num_hidden)

    fwd = jax.jit(speech_postnet_forward, static_argnames=("tile_l",))

    # Case 1: module-sized demo shapes (single L tile).
    x = jax.random.normal(xkey, (batch, length, num_mels), jnp.float32)
    out = jax.block_until_ready(fwd(params, x))
    assert out.shape == (batch, length, num_mels), out.shape
    assert bool(jnp.all(jnp.isfinite(out)))
    ref = speech_postnet_reference(params, x)
    err = float(jnp.max(jnp.abs(out - ref)))
    assert err < 4e-2, f"case1 max abs err {err}"   # bf16 operands, f32 accumulation

    # Case 2: exercises the length tiling + causal-halo recompute/zero-mask path (2 tiles).
    x2 = jax.random.normal(x2key, (batch, 64, num_mels), jnp.float32)
    out2 = jax.block_until_ready(fwd(params, x2, tile_l=32))
    assert out2.shape == (batch, 64, num_mels), out2.shape
    ref2 = speech_postnet_reference(params, x2)
    err2 = float(jnp.max(jnp.abs(out2 - ref2)))
    assert err2 < 4e-2, f"case2 max abs err {err2}"

    print("KERNEL_OK")
</pallas_src>

<mosaic_0001>
module attributes {stable_mosaic.version = 11 : i64} {
  func.func @_postnet_kernel(%arg0: i32, %arg1: i32, %arg2: memref<1x1x36x8xbf16, #tpu.memory_space<vmem>>, %arg3: memref<40x32xbf16, #tpu.memory_space<vmem>>, %arg4: memref<3x5x32x32xbf16, #tpu.memory_space<vmem>>, %arg5: memref<5x32x128xbf16, #tpu.memory_space<vmem>>, %arg6: memref<1x32xf32, #tpu.memory_space<vmem>>, %arg7: memref<3x32xf32, #tpu.memory_space<vmem>>, %arg8: memref<1x128xf32, #tpu.memory_space<vmem>>, %arg9: memref<1x16x128xf32, #tpu.memory_space<vmem>>, %arg10: memref<32x32xbf16, #tpu.memory_space<vmem>>, %arg11: memref<32x32xbf16, #tpu.memory_space<vmem>>) attributes {dimension_semantics = [#tpu.dimension_semantics<parallel>, #tpu.dimension_semantics<parallel>], iteration_bounds = array<i64: 2, 1>, scalar_prefetch = 0 : i64, scratch_operands = 2 : i64, tpu.core_type = #tpu.core_type<tc>, window_params = [{transform_indices = @transform_0, window_bounds = array<i64: 1, 1, 36, 8>}, {pipeline_mode = #tpu.pipeline_mode<synchronous>, transform_indices = @transform_1, window_bounds = array<i64: 40, 32>}, {pipeline_mode = #tpu.pipeline_mode<synchronous>, transform_indices = @transform_2, window_bounds = array<i64: 3, 5, 32, 32>}, {pipeline_mode = #tpu.pipeline_mode<synchronous>, transform_indices = @transform_3, window_bounds = array<i64: 5, 32, 128>}, {pipeline_mode = #tpu.pipeline_mode<synchronous>, transform_indices = @transform_4, window_bounds = array<i64: 1, 32>}, {pipeline_mode = #tpu.pipeline_mode<synchronous>, transform_indices = @transform_5, window_bounds = array<i64: 3, 32>}, {pipeline_mode = #tpu.pipeline_mode<synchronous>, transform_indices = @transform_6, window_bounds = array<i64: 1, 128>}, {transform_indices = @transform_7, window_bounds = array<i64: 1, 16, 128>}]} {
    %c0 = arith.constant 0 : index
    %c0_0 = arith.constant 0 : index
    %c0_1 = arith.constant 0 : index
    %c0_2 = arith.constant 0 : index
    %0 = vector.load %arg2[%c0, %c0_0, %c0_1, %c0_2] : memref<1x1x36x8xbf16, #tpu.memory_space<vmem>>, vector<1x1x36x8xbf16>
    %1 = vector.shape_cast %0 : vector<1x1x36x8xbf16> to vector<36x8xbf16>
    %2 = vector.extract_strided_slice %1 {offsets = [0, 0], sizes = [32, 8], strides = [1, 1]} : vector<36x8xbf16> to vector<32x8xbf16>
    %3 = vector.extract_strided_slice %1 {offsets = [1, 0], sizes = [32, 8], strides = [1, 1]} : vector<36x8xbf16> to vector<32x8xbf16>
    %4 = vector.extract_strided_slice %1 {offsets = [2, 0], sizes = [32, 8], strides = [1, 1]} : vector<36x8xbf16> to vector<32x8xbf16>
    %5 = vector.extract_strided_slice %1 {offsets = [3, 0], sizes = [32, 8], strides = [1, 1]} : vector<36x8xbf16> to vector<32x8xbf16>
    %6 = vector.extract_strided_slice %1 {offsets = [4, 0], sizes = [32, 8], strides = [1, 1]} : vector<36x8xbf16> to vector<32x8xbf16>
    %7 = tpu.concatenate %2, %3, %4, %5, %6 in 1 : vector<32x8xbf16>, vector<32x8xbf16>, vector<32x8xbf16>, vector<32x8xbf16>, vector<32x8xbf16> -> vector<32x40xbf16>
    %c0_3 = arith.constant 0 : index
    %c0_4 = arith.constant 0 : index
    %8 = vector.load %arg3[%c0_3, %c0_4] : memref<40x32xbf16, #tpu.memory_space<vmem>>, vector<40x32xbf16>
    %cst = arith.constant dense<0.000000e+00> : vector<32x32xf32>
    %9 = tpu.matmul %7, %8, %cst {dimension_numbers = #tpu.dot_dimension_numbers<[1], [0], [0], [1], [0, 0, 1, 1], [], []>} : vector<32x40xbf16>, vector<40x32xbf16>, vector<32x32xf32> -> vector<32x32xf32>
    %c0_5 = arith.constant 0 : index
    %c0_6 = arith.constant 0 : index
    %10 = vector.load %arg6[%c0_5, %c0_6] : memref<1x32xf32, #tpu.memory_space<vmem>>, vector<1x32xf32>
    %11 = vector.broadcast %10 : vector<1x32xf32> to vector<32x32xf32>
    %12 = arith.addf %9, %11 : vector<32x32xf32>
    %13 = math.tanh %12 : vector<32x32xf32>
    %14 = tpu.iota {dimensions = array<i32: 0>} : vector<32x1xi32>
    %c0_i32 = arith.constant 0 : i32
    %15 = arith.cmpi sgt, %arg1, %c0_i32 : i32
    %c16_i32 = arith.constant 16 : i32
    %16 = vector.broadcast %c16_i32 : i32 to vector<32x1xi32>
    %17 = arith.cmpi sge, %14, %16 : vector<32x1xi32>
    %18 = vector.broadcast %15 : i1 to vector<32x1xi1>
    %19 = arith.ori %18, %17 : vector<32x1xi1>
    %cst_7 = arith.constant 0.000000e+00 : f32
    %20 = vector.shape_cast %19 : vector<32x1xi1> to vector<32x1xi1>
    %21 = vector.broadcast %20 : vector<32x1xi1> to vector<32x32xi1>
    %22 = vector.broadcast %cst_7 : f32 to vector<32x32xf32>
    %23 = arith.select %21, %13, %22 : vector<32x32xi1>, vector<32x32xf32>
    %24 = arith.truncf %23 : vector<32x32xf32> to vector<32x32xbf16>
    %c0_8 = arith.constant 0 : index
    %c0_9 = arith.constant 0 : index
    %25 = vector.load %arg10[%c0_8, %c0_9] : memref<32x32xbf16, #tpu.memory_space<vmem>>, vector<32x32xbf16>
    tpu.vector_store %arg10[%c0_8, %c0_9], %24 {strides = array<i32>} : memref<32x32xbf16, #tpu.memory_space<vmem>>, vector<32x32xbf16>,
    %c0_10 = arith.constant 0 : index
    %c0_11 = arith.constant 0 : index
    %26 = vector.load %arg10[%c0_10, %c0_11] : memref<32x32xbf16, #tpu.memory_space<vmem>>, vector<28x32xbf16>
    %c0_12 = arith.constant 0 : index
    %c0_13 = arith.constant 0 : index
    %c0_14 = arith.constant 0 : index
    %c0_15 = arith.constant 0 : index
    %27 = vector.load %arg4[%c0_12, %c0_13, %c0_14, %c0_15] : memref<3x5x32x32xbf16, #tpu.memory_space<vmem>>, vector<1x1x32x32xbf16>
    %28 = vector.shape_cast %27 : vector<1x1x32x32xbf16> to vector<32x32xbf16>
    %cst_16 = arith.constant dense<0.000000e+00> : vector<28x32xf32>
    %29 = tpu.matmul %26, %28, %cst_16 {dimension_numbers = #tpu.dot_dimension_numbers<[1], [0], [0], [1], [0, 0, 1, 1], [], []>} : vector<28x32xbf16>, vector<32x32xbf16>, vector<28x32xf32> -> vector<28x32xf32>
    %c1 = arith.constant 1 : index
    %c0_17 = arith.constant 0 : index
    %30 = vector.load %arg10[%c1, %c0_17] : memref<32x32xbf16, #tpu.memory_space<vmem>>, vector<28x32xbf16>
    %c0_18 = arith.constant 0 : index
    %c1_19 = arith.constant 1 : index
    %c0_20 = arith.constant 0 : index
    %c0_21 = arith.constant 0 : index
    %31 = vector.load %arg4[%c0_18, %c1_19, %c0_20, %c0_21] : memref<3x5x32x32xbf16, #tpu.memory_space<vmem>>, vector<1x1x32x32xbf16>
    %32 = vector.shape_cast %31 : vector<1x1x32x32xbf16> to vector<32x32xbf16>
    %cst_22 = arith.constant dense<0.000000e+00> : vector<28x32xf32>
    %33 = tpu.matmul %30, %32, %cst_22 {dimension_numbers = #tpu.dot_dimension_numbers<[1], [0], [0], [1], [0, 0, 1, 1], [], []>} : vector<28x32xbf16>, vector<32x32xbf16>, vector<28x32xf32> -> vector<28x32xf32>
    %34 = arith.addf %29, %33 : vector<28x32xf32>
    %c2 = arith.constant 2 : index
    %c0_23 = arith.constant 0 : index
    %35 = vector.load %arg10[%c2, %c0_23] : memref<32x32xbf16, #tpu.memory_space<vmem>>, vector<28x32xbf16>
    %c0_24 = arith.constant 0 : index
    %c2_25 = arith.constant 2 : index
    %c0_26 = arith.constant 0 : index
    %c0_27 = arith.constant 0 : index
    %36 = vector.load %arg4[%c0_24, %c2_25, %c0_26, %c0_27] : memref<3x5x32x32xbf16, #tpu.memory_space<vmem>>, vector<1x1x32x32xbf16>
    %37 = vector.shape_cast %36 : vector<1x1x32x32xbf16> to vector<32x32xbf16>
    %cst_28 = arith.constant dense<0.000000e+00> : vector<28x32xf32>
    %38 = tpu.matmul %35, %37, %cst_28 {dimension_numbers = #tpu.dot_dimension_numbers<[1], [0], [0], [1], [0, 0, 1, 1], [], []>} : vector<28x32xbf16>, vector<32x32xbf16>, vector<28x32xf32> -> vector<28x32xf32>
    %39 = arith.addf %34, %38 : vector<28x32xf32>
    %c3 = arith.constant 3 : index
    %c0_29 = arith.constant 0 : index
    %40 = vector.load %arg10[%c3, %c0_29] : memref<32x32xbf16, #tpu.memory_space<vmem>>, vector<28x32xbf16>
    %c0_30 = arith.constant 0 : index
    %c3_31 = arith.constant 3 : index
    %c0_32 = arith.constant 0 : index
    %c0_33 = arith.constant 0 : index
    %41 = vector.load %arg4[%c0_30, %c3_31, %c0_32, %c0_33] : memref<3x5x32x32xbf16, #tpu.memory_space<vmem>>, vector<1x1x32x32xbf16>
    %42 = vector.shape_cast %41 : vector<1x1x32x32xbf16> to vector<32x32xbf16>
    %cst_34 = arith.constant dense<0.000000e+00> : vector<28x32xf32>
    %43 = tpu.matmul %40, %42, %cst_34 {dimension_numbers = #tpu.dot_dimension_numbers<[1], [0], [0], [1], [0, 0, 1, 1], [], []>} : vector<28x32xbf16>, vector<32x32xbf16>, vector<28x32xf32> -> vector<28x32xf32>
    %44 = arith.addf %39, %43 : vector<28x32xf32>
    %c4 = arith.constant 4 : index
    %c0_35 = arith.constant 0 : index
    %45 = vector.load %arg10[%c4, %c0_35] : memref<32x32xbf16, #tpu.memory_space<vmem>>, vector<28x32xbf16>
    %c0_36 = arith.constant 0 : index
    %c4_37 = arith.constant 4 : index
    %c0_38 = arith.constant 0 : index
    %c0_39 = arith.constant 0 : index
    %46 = vector.load %arg4[%c0_36, %c4_37, %c0_38, %c0_39] : memref<3x5x32x32xbf16, #tpu.memory_space<vmem>>, vector<1x1x32x32xbf16>
    %47 = vector.shape_cast %46 : vector<1x1x32x32xbf16> to vector<32x32xbf16>
    %cst_40 = arith.constant dense<0.000000e+00> : vector<28x32xf32>
    %48 = tpu.matmul %45, %47, %cst_40 {dimension_numbers = #tpu.dot_dimension_numbers<[1], [0], [0], [1], [0, 0, 1, 1], [], []>} : vector<28x32xbf16>, vector<32x32xbf16>, vector<28x32xf32> -> vector<28x32xf32>
    %49 = arith.addf %44, %48 : vector<28x32xf32>
    %c0_41 = arith.constant 0 : index
    %c0_42 = arith.constant 0 : index
    %50 = vector.load %arg7[%c0_41, %c0_42] : memref<3x32xf32, #tpu.memory_space<vmem>>, vector<1x32xf32>
    %51 = vector.broadcast %50 : vector<1x32xf32> to vector<28x32xf32>
    %52 = arith.addf %49, %51 : vector<28x32xf32>
    %53 = math.tanh %52 : vector<28x32xf32>
    %54 = tpu.iota {dimensions = array<i32: 0>} : vector<28x1xi32>
    %c0_i32_43 = arith.constant 0 : i32
    %55 = arith.cmpi sgt, %arg1, %c0_i32_43 : i32
    %c12_i32 = arith.constant 12 : i32
    %56 = vector.broadcast %c12_i32 : i32 to vector<28x1xi32>
    %57 = arith.cmpi sge, %54, %56 : vector<28x1xi32>
    %58 = vector.broadcast %55 : i1 to vector<28x1xi1>
    %59 = arith.ori %58, %57 : vector<28x1xi1>
    %cst_44 = arith.constant 0.000000e+00 : f32
    %60 = vector.shape_cast %59 : vector<28x1xi1> to vector<28x1xi1>
    %61 = vector.broadcast %60 : vector<28x1xi1> to vector<28x32xi1>
    %62 = vector.broadcast %cst_44 : f32 to vector<28x32xf32>
    %63 = arith.select %61, %53, %62 : vector<28x32xi1>, vector<28x32xf32>
    %64 = arith.truncf %63 : vector<28x32xf32> to vector<28x32xbf16>
    %c0_45 = arith.constant 0 : index
    %c0_46 = arith.constant 0 : index
    %65 = vector.load %arg11[%c0_45, %c0_46] : memref<32x32xbf16, #tpu.memory_space<vmem>>, vector<28x32xbf16>
    tpu.vector_store %arg11[%c0_45, %c0_46], %64 {strides = array<i32>} : memref<32x32xbf16, #tpu.memory_space<vmem>>, vector<28x32xbf16>,
    %c0_47 = arith.constant 0 : index
    %c0_48 = arith.constant 0 : index
    %66 = vector.load %arg11[%c0_47, %c0_48] : memref<32x32xbf16, #tpu.memory_space<vmem>>, vector<24x32xbf16>
    %c1_49 = arith.constant 1 : index
    %c0_50 = arith.constant 0 : index
    %c0_51 = arith.constant 0 : index
    %c0_52 = arith.constant 0 : index
    %67 = vector.load %arg4[%c1_49, %c0_50, %c0_51, %c0_52] : memref<3x5x32x32xbf16, #tpu.memory_space<vmem>>, vector<1x1x32x32xbf16>
    %68 = vector.shape_cast %67 : vector<1x1x32x32xbf16> to vector<32x32xbf16>
    %cst_53 = arith.constant dense<0.000000e+00> : vector<24x32xf32>
    %69 = tpu.matmul %66, %68, %cst_53 {dimension_numbers = #tpu.dot_dimension_numbers<[1], [0], [0], [1], [0, 0, 1, 1], [], []>} : vector<24x32xbf16>, vector<32x32xbf16>, vector<24x32xf32> -> vector<24x32xf32>
    %c1_54 = arith.constant 1 : index
    %c0_55 = arith.constant 0 : index
    %70 = vector.load %arg11[%c1_54, %c0_55] : memref<32x32xbf16, #tpu.memory_space<vmem>>, vector<24x32xbf16>
    %c1_56 = arith.constant 1 : index
    %c1_57 = arith.constant 1 : index
    %c0_58 = arith.constant 0 : index
    %c0_59 = arith.constant 0 : index
    %71 = vector.load %arg4[%c1_56, %c1_57, %c0_58, %c0_59] : memref<3x5x32x32xbf16, #tpu.memory_space<vmem>>, vector<1x1x32x32xbf16>
    %72 = vector.shape_cast %71 : vector<1x1x32x32xbf16> to vector<32x32xbf16>
    %cst_60 = arith.constant dense<0.000000e+00> : vector<24x32xf32>
    %73 = tpu.matmul %70, %72, %cst_60 {dimension_numbers = #tpu.dot_dimension_numbers<[1], [0], [0], [1], [0, 0, 1, 1], [], []>} : vector<24x32xbf16>, vector<32x32xbf16>, vector<24x32xf32> -> vector<24x32xf32>
    %74 = arith.addf %69, %73 : vector<24x32xf32>
    %c2_61 = arith.constant 2 : index
    %c0_62 = arith.constant 0 : index
    %75 = vector.load %arg11[%c2_61, %c0_62] : memref<32x32xbf16, #tpu.memory_space<vmem>>, vector<24x32xbf16>
    %c1_63 = arith.constant 1 : index
    %c2_64 = arith.constant 2 : index
    %c0_65 = arith.constant 0 : index
    %c0_66 = arith.constant 0 : index
    %76 = vector.load %arg4[%c1_63, %c2_64, %c0_65, %c0_66] : memref<3x5x32x32xbf16, #tpu.memory_space<vmem>>, vector<1x1x32x32xbf16>
    %77 = vector.shape_cast %76 : vector<1x1x32x32xbf16> to vector<32x32xbf16>
    %cst_67 = arith.constant dense<0.000000e+00> : vector<24x32xf32>
    %78 = tpu.matmul %75, %77, %cst_67 {dimension_numbers = #tpu.dot_dimension_numbers<[1], [0], [0], [1], [0, 0, 1, 1], [], []>} : vector<24x32xbf16>, vector<32x32xbf16>, vector<24x32xf32> -> vector<24x32xf32>
    %79 = arith.addf %74, %78 : vector<24x32xf32>
    %c3_68 = arith.constant 3 : index
    %c0_69 = arith.constant 0 : index
    %80 = vector.load %arg11[%c3_68, %c0_69] : memref<32x32xbf16, #tpu.memory_space<vmem>>, vector<24x32xbf16>
    %c1_70 = arith.constant 1 : index
    %c3_71 = arith.constant 3 : index
    %c0_72 = arith.constant 0 : index
    %c0_73 = arith.constant 0 : index
    %81 = vector.load %arg4[%c1_70, %c3_71, %c0_72, %c0_73] : memref<3x5x32x32xbf16, #tpu.memory_space<vmem>>, vector<1x1x32x32xbf16>
    %82 = vector.shape_cast %81 : vector<1x1x32x32xbf16> to vector<32x32xbf16>
    %cst_74 = arith.constant dense<0.000000e+00> : vector<24x32xf32>
    %83 = tpu.matmul %80, %82, %cst_74 {dimension_numbers = #tpu.dot_dimension_numbers<[1], [0], [0], [1], [0, 0, 1, 1], [], []>} : vector<24x32xbf16>, vector<32x32xbf16>, vector<24x32xf32> -> vector<24x32xf32>
    %84 = arith.addf %79, %83 : vector<24x32xf32>
    %c4_75 = arith.constant 4 : index
    %c0_76 = arith.constant 0 : index
    %85 = vector.load %arg11[%c4_75, %c0_76] : memref<32x32xbf16, #tpu.memory_space<vmem>>, vector<24x32xbf16>
    %c1_77 = arith.constant 1 : index
    %c4_78 = arith.constant 4 : index
    %c0_79 = arith.constant 0 : index
    %c0_80 = arith.constant 0 : index
    %86 = vector.load %arg4[%c1_77, %c4_78, %c0_79, %c0_80] : memref<3x5x32x32xbf16, #tpu.memory_space<vmem>>, vector<1x1x32x32xbf16>
    %87 = vector.shape_cast %86 : vector<1x1x32x32xbf16> to vector<32x32xbf16>
    %cst_81 = arith.constant dense<0.000000e+00> : vector<24x32xf32>
    %88 = tpu.matmul %85, %87, %cst_81 {dimension_numbers = #tpu.dot_dimension_numbers<[1], [0], [0], [1], [0, 0, 1, 1], [], []>} : vector<24x32xbf16>, vector<32x32xbf16>, vector<24x32xf32> -> vector<24x32xf32>
    %89 = arith.addf %84, %88 : vector<24x32xf32>
    %c1_82 = arith.constant 1 : index
    %c0_83 = arith.constant 0 : index
    %90 = vector.load %arg7[%c1_82, %c0_83] : memref<3x32xf32, #tpu.memory_space<vmem>>, vector<1x32xf32>
    %91 = vector.broadcast %90 : vector<1x32xf32> to vector<24x32xf32>
    %92 = arith.addf %89, %91 : vector<24x32xf32>
    %93 = math.tanh %92 : vector<24x32xf32>
    %94 = tpu.iota {dimensions = array<i32: 0>} : vector<24x1xi32>
    %c0_i32_84 = arith.constant 0 : i32
    %95 = arith.cmpi sgt, %arg1, %c0_i32_84 : i32
    %c8_i32 = arith.constant 8 : i32
    %96 = vector.broadcast %c8_i32 : i32 to vector<24x1xi32>
    %97 = arith.cmpi sge, %94, %96 : vector<24x1xi32>
    %98 = vector.broadcast %95 : i1 to vector<24x1xi1>
    %99 = arith.ori %98, %97 : vector<24x1xi1>
    %cst_85 = arith.constant 0.000000e+00 : f32
    %100 = vector.shape_cast %99 : vector<24x1xi1> to vector<24x1xi1>
    %101 = vector.broadcast %100 : vector<24x1xi1> to vector<24x32xi1>
    %102 = vector.broadcast %cst_85 : f32 to vector<24x32xf32>
    %103 = arith.select %101, %93, %102 : vector<24x32xi1>, vector<24x32xf32>
    %104 = arith.truncf %103 : vector<24x32xf32> to vector<24x32xbf16>
    %c0_86 = arith.constant 0 : index
    %c0_87 = arith.constant 0 : index
    %105 = vector.load %arg10[%c0_86, %c0_87] : memref<32x32xbf16, #tpu.memory_space<vmem>>, vector<24x32xbf16>
    tpu.vector_store %arg10[%c0_86, %c0_87], %104 {strides = array<i32>} : memref<32x32xbf16, #tpu.memory_space<vmem>>, vector<24x32xbf16>,
    %c0_88 = arith.constant 0 : index
    %c0_89 = arith.constant 0 : index
    %106 = vector.load %arg10[%c0_88, %c0_89] : memref<32x32xbf16, #tpu.memory_space<vmem>>, vector<20x32xbf16>
    %c2_90 = arith.constant 2 : index
    %c0_91 = arith.constant 0 : index
    %c0_92 = arith.constant 0 : index
    %c0_93 = arith.constant 0 : index
    %107 = vector.load %arg4[%c2_90, %c0_91, %c0_92, %c0_93] : memref<3x5x32x32xbf16, #tpu.memory_space<vmem>>, vector<1x1x32x32xbf16>
    %108 = vector.shape_cast %107 : vector<1x1x32x32xbf16> to vector<32x32xbf16>
    %cst_94 = arith.constant dense<0.000000e+00> : vector<20x32xf32>
    %109 = tpu.matmul %106, %108, %cst_94 {dimension_numbers = #tpu.dot_dimension_numbers<[1], [0], [0], [1], [0, 0, 1, 1], [], []>} : vector<20x32xbf16>, vector<32x32xbf16>, vector<20x32xf32> -> vector<20x32xf32>
    %c1_95 = arith.constant 1 : index
    %c0_96 = arith.constant 0 : index
    %110 = vector.load %arg10[%c1_95, %c0_96] : memref<32x32xbf16, #tpu.memory_space<vmem>>, vector<20x32xbf16>
    %c2_97 = arith.constant 2 : index
    %c1_98 = arith.constant 1 : index
    %c0_99 = arith.constant 0 : index
    %c0_100 = arith.constant 0 : index
    %111 = vector.load %arg4[%c2_97, %c1_98, %c0_99, %c0_100] : memref<3x5x32x32xbf16, #tpu.memory_space<vmem>>, vector<1x1x32x32xbf16>
    %112 = vector.shape_cast %111 : vector<1x1x32x32xbf16> to vector<32x32xbf16>
    %cst_101 = arith.constant dense<0.000000e+00> : vector<20x32xf32>
    %113 = tpu.matmul %110, %112, %cst_101 {dimension_numbers = #tpu.dot_dimension_numbers<[1], [0], [0], [1], [0, 0, 1, 1], [], []>} : vector<20x32xbf16>, vector<32x32xbf16>, vector<20x32xf32> -> vector<20x32xf32>
    %114 = arith.addf %109, %113 : vector<20x32xf32>
    %c2_102 = arith.constant 2 : index
    %c0_103 = arith.constant 0 : index
    %115 = vector.load %arg10[%c2_102, %c0_103] : memref<32x32xbf16, #tpu.memory_space<vmem>>, vector<20x32xbf16>
    %c2_104 = arith.constant 2 : index
    %c2_105 = arith.constant 2 : index
    %c0_106 = arith.constant 0 : index
    %c0_107 = arith.constant 0 : index
    %116 = vector.load %arg4[%c2_104, %c2_105, %c0_106, %c0_107] : memref<3x5x32x32xbf16, #tpu.memory_space<vmem>>, vector<1x1x32x32xbf16>
    %117 = vector.shape_cast %116 : vector<1x1x32x32xbf16> to vector<32x32xbf16>
    %cst_108 = arith.constant dense<0.000000e+00> : vector<20x32xf32>
    %118 = tpu.matmul %115, %117, %cst_108 {dimension_numbers = #tpu.dot_dimension_numbers<[1], [0], [0], [1], [0, 0, 1, 1], [], []>} : vector<20x32xbf16>, vector<32x32xbf16>, vector<20x32xf32> -> vector<20x32xf32>
    %119 = arith.addf %114, %118 : vector<20x32xf32>
    %c3_109 = arith.constant 3 : index
    %c0_110 = arith.constant 0 : index
    %120 = vector.load %arg10[%c3_109, %c0_110] : memref<32x32xbf16, #tpu.memory_space<vmem>>, vector<20x32xbf16>
    %c2_111 = arith.constant 2 : index
    %c3_112 = arith.constant 3 : index
    %c0_113 = arith.constant 0 : index
    %c0_114 = arith.constant 0 : index
    %121 = vector.load %arg4[%c2_111, %c3_112, %c0_113, %c0_114] : memref<3x5x32x32xbf16, #tpu.memory_space<vmem>>, vector<1x1x32x32xbf16>
    %122 = vector.shape_cast %121 : vector<1x1x32x32xbf16> to vector<32x32xbf16>
    %cst_115 = arith.constant dense<0.000000e+00> : vector<20x32xf32>
    %123 = tpu.matmul %120, %122, %cst_115 {dimension_numbers = #tpu.dot_dimension_numbers<[1], [0], [0], [1], [0, 0, 1, 1], [], []>} : vector<20x32xbf16>, vector<32x32xbf16>, vector<20x32xf32> -> vector<20x32xf32>
    %124 = arith.addf %119, %123 : vector<20x32xf32>
    %c4_116 = arith.constant 4 : index
    %c0_117 = arith.constant 0 : index
    %125 = vector.load %arg10[%c4_116, %c0_117] : memref<32x32xbf16, #tpu.memory_space<vmem>>, vector<20x32xbf16>
    %c2_118 = arith.constant 2 : index
    %c4_119 = arith.constant 4 : index
    %c0_120 = arith.constant 0 : index
    %c0_121 = arith.constant 0 : index
    %126 = vector.load %arg4[%c2_118, %c4_119, %c0_120, %c0_121] : memref<3x5x32x32xbf16, #tpu.memory_space<vmem>>, vector<1x1x32x32xbf16>
    %127 = vector.shape_cast %126 : vector<1x1x32x32xbf16> to vector<32x32xbf16>
    %cst_122 = arith.constant dense<0.000000e+00> : vector<20x32xf32>
    %128 = tpu.matmul %125, %127, %cst_122 {dimension_numbers = #tpu.dot_dimension_numbers<[1], [0], [0], [1], [0, 0, 1, 1], [], []>} : vector<20x32xbf16>, vector<32x32xbf16>, vector<20x32xf32> -> vector<20x32xf32>
    %129 = arith.addf %124, %128 : vector<20x32xf32>
    %c2_123 = arith.constant 2 : index
    %c0_124 = arith.constant 0 : index
    %130 = vector.load %arg7[%c2_123, %c0_124] : memref<3x32xf32, #tpu.memory_space<vmem>>, vector<1x32xf32>
    %131 = vector.broadcast %130 : vector<1x32xf32> to vector<20x32xf32>
    %132 = arith.addf %129, %131 : vector<20x32xf32>
    %133 = math.tanh %132 : vector<20x32xf32>
    %134 = tpu.iota {dimensions = array<i32: 0>} : vector<20x1xi32>
    %c0_i32_125 = arith.constant 0 : i32
    %135 = arith.cmpi sgt, %arg1, %c0_i32_125 : i32
    %c4_i32 = arith.constant 4 : i32
    %136 = vector.broadcast %c4_i32 : i32 to vector<20x1xi32>
    %137 = arith.cmpi sge, %134, %136 : vector<20x1xi32>
    %138 = vector.broadcast %135 : i1 to vector<20x1xi1>
    %139 = arith.ori %138, %137 : vector<20x1xi1>
    %cst_126 = arith.constant 0.000000e+00 : f32
    %140 = vector.shape_cast %139 : vector<20x1xi1> to vector<20x1xi1>
    %141 = vector.broadcast %140 : vector<20x1xi1> to vector<20x32xi1>
    %142 = vector.broadcast %cst_126 : f32 to vector<20x32xf32>
    %143 = arith.select %141, %133, %142 : vector<20x32xi1>, vector<20x32xf32>
    %144 = arith.truncf %143 : vector<20x32xf32> to vector<20x32xbf16>
    %c0_127 = arith.constant 0 : index
    %c0_128 = arith.constant 0 : index
    %145 = vector.load %arg11[%c0_127, %c0_128] : memref<32x32xbf16, #tpu.memory_space<vmem>>, vector<20x32xbf16>
    tpu.vector_store %arg11[%c0_127, %c0_128], %144 {strides = array<i32>} : memref<32x32xbf16, #tpu.memory_space<vmem>>, vector<20x32xbf16>,
    %c0_129 = arith.constant 0 : index
    %c0_130 = arith.constant 0 : index
    %146 = vector.load %arg11[%c0_129, %c0_130] : memref<32x32xbf16, #tpu.memory_space<vmem>>, vector<16x32xbf16>
    %c0_131 = arith.constant 0 : index
    %c0_132 = arith.constant 0 : index
    %c0_133 = arith.constant 0 : index
    %147 = vector.load %arg5[%c0_131, %c0_132, %c0_133] : memref<5x32x128xbf16, #tpu.memory_space<vmem>>, vector<1x32x128xbf16>
    %148 = vector.shape_cast %147 : vector<1x32x128xbf16> to vector<32x128xbf16>
    %cst_134 = arith.constant dense<0.000000e+00> : vector<16x128xf32>
    %149 = tpu.matmul %146, %148, %cst_134 {dimension_numbers = #tpu.dot_dimension_numbers<[1], [0], [0], [1], [0, 0, 1, 1], [], []>} : vector<16x32xbf16>, vector<32x128xbf16>, vector<16x128xf32> -> vector<16x128xf32>
    %c1_135 = arith.constant 1 : index
    %c0_136 = arith.constant 0 : index
    %150 = vector.load %arg11[%c1_135, %c0_136] : memref<32x32xbf16, #tpu.memory_space<vmem>>, vector<16x32xbf16>
    %c1_137 = arith.constant 1 : index
    %c0_138 = arith.constant 0 : index
    %c0_139 = arith.constant 0 : index
    %151 = vector.load %arg5[%c1_137, %c0_138, %c0_139] : memref<5x32x128xbf16, #tpu.memory_space<vmem>>, vector<1x32x128xbf16>
    %152 = vector.shape_cast %151 : vector<1x32x128xbf16> to vector<32x128xbf16>
    %cst_140 = arith.constant dense<0.000000e+00> : vector<16x128xf32>
    %153 = tpu.matmul %150, %152, %cst_140 {dimension_numbers = #tpu.dot_dimension_numbers<[1], [0], [0], [1], [0, 0, 1, 1], [], []>} : vector<16x32xbf16>, vector<32x128xbf16>, vector<16x128xf32> -> vector<16x128xf32>
    %154 = arith.addf %149, %153 : vector<16x128xf32>
    %c2_141 = arith.constant 2 : index
    %c0_142 = arith.constant 0 : index
    %155 = vector.load %arg11[%c2_141, %c0_142] : memref<32x32xbf16, #tpu.memory_space<vmem>>, vector<16x32xbf16>
    %c2_143 = arith.constant 2 : index
    %c0_144 = arith.constant 0 : index
    %c0_145 = arith.constant 0 : index
    %156 = vector.load %arg5[%c2_143, %c0_144, %c0_145] : memref<5x32x128xbf16, #tpu.memory_space<vmem>>, vector<1x32x128xbf16>
    %157 = vector.shape_cast %156 : vector<1x32x128xbf16> to vector<32x128xbf16>
    %cst_146 = arith.constant dense<0.000000e+00> : vector<16x128xf32>
    %158 = tpu.matmul %155, %157, %cst_146 {dimension_numbers = #tpu.dot_dimension_numbers<[1], [0], [0], [1], [0, 0, 1, 1], [], []>} : vector<16x32xbf16>, vector<32x128xbf16>, vector<16x128xf32> -> vector<16x128xf32>
    %159 = arith.addf %154, %158 : vector<16x128xf32>
    %c3_147 = arith.constant 3 : index
    %c0_148 = arith.constant 0 : index
    %160 = vector.load %arg11[%c3_147, %c0_148] : memref<32x32xbf16, #tpu.memory_space<vmem>>, vector<16x32xbf16>
    %c3_149 = arith.constant 3 : index
    %c0_150 = arith.constant 0 : index
    %c0_151 = arith.constant 0 : index
    %161 = vector.load %arg5[%c3_149, %c0_150, %c0_151] : memref<5x32x128xbf16, #tpu.memory_space<vmem>>, vector<1x32x128xbf16>
    %162 = vector.shape_cast %161 : vector<1x32x128xbf16> to vector<32x128xbf16>
    %cst_152 = arith.constant dense<0.000000e+00> : vector<16x128xf32>
    %163 = tpu.matmul %160, %162, %cst_152 {dimension_numbers = #tpu.dot_dimension_numbers<[1], [0], [0], [1], [0, 0, 1, 1], [], []>} : vector<16x32xbf16>, vector<32x128xbf16>, vector<16x128xf32> -> vector<16x128xf32>
    %164 = arith.addf %159, %163 : vector<16x128xf32>
    %c4_153 = arith.constant 4 : index
    %c0_154 = arith.constant 0 : index
    %165 = vector.load %arg11[%c4_153, %c0_154] : memref<32x32xbf16, #tpu.memory_space<vmem>>, vector<16x32xbf16>
    %c4_155 = arith.constant 4 : index
    %c0_156 = arith.constant 0 : index
    %c0_157 = arith.constant 0 : index
    %166 = vector.load %arg5[%c4_155, %c0_156, %c0_157] : memref<5x32x128xbf16, #tpu.memory_space<vmem>>, vector<1x32x128xbf16>
    %167 = vector.shape_cast %166 : vector<1x32x128xbf16> to vector<32x128xbf16>
    %cst_158 = arith.constant dense<0.000000e+00> : vector<16x128xf32>
    %168 = tpu.matmul %165, %167, %cst_158 {dimension_numbers = #tpu.dot_dimension_numbers<[1], [0], [0], [1], [0, 0, 1, 1], [], []>} : vector<16x32xbf16>, vector<32x128xbf16>, vector<16x128xf32> -> vector<16x128xf32>
    %169 = arith.addf %164, %168 : vector<16x128xf32>
    %c0_159 = arith.constant 0 : index
    %c0_160 = arith.constant 0 : index
    %170 = vector.load %arg8[%c0_159, %c0_160] : memref<1x128xf32, #tpu.memory_space<vmem>>, vector<1x128xf32>
    %171 = vector.broadcast %170 : vector<1x128xf32> to vector<16x128xf32>
    %172 = arith.addf %169, %171 : vector<16x128xf32>
    %c0_161 = arith.constant 0 : index
    %c0_162 = arith.constant 0 : index
    %c0_163 = arith.constant 0 : index
    %173 = vector.load %arg9[%c0_161, %c0_162, %c0_163] : memref<1x16x128xf32, #tpu.memory_space<vmem>>, vector<1x16x128xf32>
    %174 = vector.shape_cast %173 : vector<1x16x128xf32> to vector<16x128xf32>
    %175 = vector.shape_cast %172 : vector<16x128xf32> to vector<1x16x128xf32>
    tpu.vector_store %arg9[%c0_161, %c0_162, %c0_163], %175 {strides = array<i32>} : memref<1x16x128xf32, #tpu.memory_space<vmem>>, vector<1x16x128xf32>,
    return
  }
  func.func @transform_0(%arg0: i32, %arg1: i32) -> (i32, i32, i32, i32) {
    %c0_i32 = arith.constant 0 : i32
    %c0_i32_0 = arith.constant 0 : i32
    %c0_i32_1 = arith.constant 0 : i32
    return %arg0, %arg1, %c0_i32, %c0_i32_0 : i32, i32, i32, i32
  }
  func.func @transform_1(%arg0: i32, %arg1: i32) -> (i32, i32) {
    %c0_i32 = arith.constant 0 : i32
    %c0_i32_0 = arith.constant 0 : i32
    %c0_i32_1 = arith.constant 0 : i32
    return %c0_i32, %c0_i32_0 : i32, i32
  }
  func.func @transform_2(%arg0: i32, %arg1: i32) -> (i32, i32, i32, i32) {
    %c0_i32 = arith.constant 0 : i32
    %c0_i32_0 = arith.constant 0 : i32
    %c0_i32_1 = arith.constant 0 : i32
    %c0_i32_2 = arith.constant 0 : i32
    %c0_i32_3 = arith.constant 0 : i32
    return %c0_i32, %c0_i32_0, %c0_i32_1, %c0_i32_2 : i32, i32, i32, i32
  }
  func.func @transform_3(%arg0: i32, %arg1: i32) -> (i32, i32, i32) {
    %c0_i32 = arith.constant 0 : i32
    %c0_i32_0 = arith.constant 0 : i32
    %c0_i32_1 = arith.constant 0 : i32
    %c0_i32_2 = arith.constant 0 : i32
    return %c0_i32, %c0_i32_0, %c0_i32_1 : i32, i32, i32
  }
  func.func @transform_4(%arg0: i32, %arg1: i32) -> (i32, i32) {
    %c0_i32 = arith.constant 0 : i32
    %c0_i32_0 = arith.constant 0 : i32
    %c0_i32_1 = arith.constant 0 : i32
    return %c0_i32, %c0_i32_0 : i32, i32
  }
  func.func @transform_5(%arg0: i32, %arg1: i32) -> (i32, i32) {
    %c0_i32 = arith.constant 0 : i32
    %c0_i32_0 = arith.constant 0 : i32
    %c0_i32_1 = arith.constant 0 : i32
    return %c0_i32, %c0_i32_0 : i32, i32
  }
  func.func @transform_6(%arg0: i32, %arg1: i32) -> (i32, i32) {
    %c0_i32 = arith.constant 0 : i32
    %c0_i32_0 = arith.constant 0 : i32
    %c0_i32_1 = arith.constant 0 : i32
    return %c0_i32, %c0_i32_0 : i32, i32
  }
  func.func @transform_7(%arg0: i32, %arg1: i32) -> (i32, i32, i32) {
    %c0_i32 = arith.constant 0 : i32
    %c0_i32_0 = arith.constant 0 : i32
    return %arg0, %arg1, %c0_i32 : i32, i32, i32
  }
}

</mosaic_0001>

<llo_original>
// kernel: speech_postnet_forward.1
$region0: #{speech_postnet_forward.1}
  #allocation0 [shape = 'u32[]', space=smem, size = 0x4, offset = 0x4, fixed_abs, tag = 'smem constant byte address 0x4 - core index']
  #allocation1 [shape = 'u32[144,128]{1,0:T(1,128)}', space=vmem, size = 0x12000, scoped, tag = 'internal scratch']
  #allocation2 [shape = 'bf16[32,32]{1,0:T(8,128)(2,1)}', space=vmem, size = 0x2000, scoped, tag = 'scratch operand']
  #allocation3 [shape = 'bf16[32,32]{1,0:T(8,128)(2,1)}', space=vmem, size = 0x2000, scoped, tag = 'scratch operand']
  %s0 = inlined_call_operand.vmem [shape: bf16[2,1,36,8], index: 0, kind: input, shape index: {}]
  %s1 = inlined_call_operand.vmem [shape: bf16[40,32], index: 1, kind: input, shape index: {}]
  %s2 = inlined_call_operand.vmem [shape: bf16[3,5,32,32], index: 2, kind: input, shape index: {}]
  %s3 = inlined_call_operand.vmem [shape: bf16[5,32,128], index: 3, kind: input, shape index: {}]
  %s4 = inlined_call_operand.vmem [shape: f32[1,32], index: 4, kind: input, shape index: {}]
  %s5 = inlined_call_operand.vmem [shape: f32[3,32], index: 5, kind: input, shape index: {}]
  %s6 = inlined_call_operand.vmem [shape: f32[1,128], index: 6, kind: input, shape index: {}]
  %s7 = inlined_call_operand.vmem [shape: f32[2,16,128], index: 7, kind: output, shape index: {}]
  %s8 = sld [smem:[#allocation0]]
  $region61: #{speech_postnet_forward.1} parent=0
    _
  %s10 = ssub.s32 1, %s8
  %s11 = scalar_select 0, %s10, %s8
  loop: start=0, step=1, limit=4
  $region2: #{speech_postnet_forward.1} parent=0 // loop_pre_header
    _
  $region3: #{speech_postnet_forward.1} parent=0 // loop_header
    %s13 = sphi 0, %s17
    %p14 = scmp.ge.s32.totalorder %s13, 4
    %s20 = sphi 0, %s32
    %s21 = sphi 0, %s28
    %s22 = sphi 0, %s20
    %s23 = sphi 0, %s21
    %s24 = sphi 0, %s22
    %s25 = sphi 0, %s23
    %s37 = sphi 0, %s39
    %s40 = sphi 0, %s37
    %s41 = sphi 0, %s40
    %s57 = sphi 0, %s41
    %s61 = sphi 0, %s61
    %s63 = sphi 0, %s61
    %s64 = sphi 0, %s63
    %s78 = sphi 0, %s64
    %s82 = sphi 0, %s82
    %s84 = sphi 0, %s82
    %s85 = sphi 0, %s84
    %s99 = sphi 0, %s85
    %s103 = sphi 0, %s103
    %s105 = sphi 0, %s103
    %s106 = sphi 0, %s105
    %s120 = sphi 0, %s106
    %s124 = sphi 0, %s124
    %s126 = sphi 0, %s124
    %s127 = sphi 0, %s126
    %s141 = sphi 0, %s127
    %s145 = sphi 0, %s145
    %s147 = sphi 0, %s145
    %s148 = sphi 0, %s147
    %s162 = sphi 0, %s148
    %s166 = sphi 0, %s166
    %s168 = sphi 0, %s166
    %s169 = sphi 0, %s168
    %s183 = sphi 0, %s169
    %s191 = sphi 0, %s193
    %s194 = sphi 0, %s191
    %s195 = sphi 0, %s194
    %s211 = sphi 0, %s195
  $region4: #{speech_postnet_forward.1} parent=0 // loop_header_branch
    %16 = sbr.rel (%p14) target = $region8
  $region5: #{speech_postnet_forward.1} parent=0 // loop_body
    %s18 = ssub.s32 %s13, 1
    %s19 = ssub.s32 %s13, 2
    %s26 = sadd.s32 1, %s21
    %p27 = scmp.ge.s32.totalorder %s26, 1
    %s28 = scalar_select %p27, 0, %s26
    %s29 = sadd.s32 1, %s20
    %s30 = scalar_select %p27, %s29, %s20
    %p31 = scmp.ge.s32.totalorder %s30, 2
    %s32 = scalar_select %p31, 0, %s30
    %s33 = ssub.s32 %s20, %s32
    %s34 = ssub.s32 %s21, %s28
    %s35 = sor.u32 %s33, %s34
    %p36 = scmp.eq.s32.totalorder %s35, 0
    %s38 = sadd.s32 %s37, 1
    %s39 = scalar_select %p36, %s37, %s38
    %p42 = pneg %p36
    %p43 = scmp.eq.s32.totalorder %s13, 1
    %p44 = por %p42, %p43
    %p45 = scmp.ne.s32.totalorder %s37, %s40
    %p46 = scmp.eq.s32.totalorder %s13, 0
    %p47 = por %p45, %p46
    %p48 = scmp.ne.s32.totalorder %s37, %s40
    %p49 = scmp.eq.s32.totalorder %s18, 1
    %p50 = por %p48, %p49
    %p51 = scmp.ne.s32.totalorder %s40, %s41
    %p52 = scmp.eq.s32.totalorder %s18, 0
    %p53 = por %p51, %p52
    %p54 = scmp.ne.s32.totalorder %s40, %s41
    %p55 = scmp.eq.s32.totalorder %s19, 1
    %p56 = por %p54, %p55
    %p58 = scmp.ne.s32.totalorder %s41, %s57
    %p59 = scmp.eq.s32.totalorder %s19, 0
    %p60 = por %p58, %p59
    %s62 = sadd.s32 %s61, 1
    %p65 = scmp.eq.s32.totalorder %s13, 1
    %p66 = scmp.ne.s32.totalorder %s61, %s63
    %p67 = scmp.eq.s32.totalorder %s13, 0
    %p68 = por %p66, %p67
    %p69 = scmp.ne.s32.totalorder %s61, %s63
    %p70 = scmp.eq.s32.totalorder %s18, 1
    %p71 = por %p69, %p70
    %p72 = scmp.ne.s32.totalorder %s63, %s64
    %p73 = scmp.eq.s32.totalorder %s18, 0
    %p74 = por %p72, %p73
    %p75 = scmp.ne.s32.totalorder %s63, %s64
    %p76 = scmp.eq.s32.totalorder %s19, 1
    %p77 = por %p75, %p76
    %p79 = scmp.ne.s32.totalorder %s64, %s78
    %p80 = scmp.eq.s32.totalorder %s19, 0
    %p81 = por %p79, %p80
    %s83 = sadd.s32 %s82, 1
    %p86 = scmp.eq.s32.totalorder %s13, 1
    %p87 = scmp.ne.s32.totalorder %s82, %s84
    %p88 = scmp.eq.s32.totalorder %s13, 0
    %p89 = por %p87, %p88
    %p90 = scmp.ne.s32.totalorder %s82, %s84
    %p91 = scmp.eq.s32.totalorder %s18, 1
    %p92 = por %p90, %p91
    %p93 = scmp.ne.s32.totalorder %s84, %s85
    %p94 = scmp.eq.s32.totalorder %s18, 0
    %p95 = por %p93, %p94
    %p96 = scmp.ne.s32.totalorder %s84, %s85
    %p97 = scmp.eq.s32.totalorder %s19, 1
    %p98 = por %p96, %p97
    %p100 = scmp.ne.s32.totalorder %s85, %s99
    %p101 = scmp.eq.s32.totalorder %s19, 0
    %p102 = por %p100, %p101
    %s104 = sadd.s32 %s103, 1
    %p107 = scmp.eq.s32.totalorder %s13, 1
    %p108 = scmp.ne.s32.totalorder %s103, %s105
    %p109 = scmp.eq.s32.totalorder %s13, 0
    %p110 = por %p108, %p109
    %p111 = scmp.ne.s32.totalorder %s103, %s105
    %p112 = scmp.eq.s32.totalorder %s18, 1
    %p113 = por %p111, %p112
    %p114 = scmp.ne.s32.totalorder %s105, %s106
    %p115 = scmp.eq.s32.totalorder %s18, 0
    %p116 = por %p114, %p115
    %p117 = scmp.ne.s32.totalorder %s105, %s106
    %p118 = scmp.eq.s32.totalorder %s19, 1
    %p119 = por %p117, %p118
    %p121 = scmp.ne.s32.totalorder %s106, %s120
    %p122 = scmp.eq.s32.totalorder %s19, 0
    %p123 = por %p121, %p122
    %s125 = sadd.s32 %s124, 1
    %p128 = scmp.eq.s32.totalorder %s13, 1
    %p129 = scmp.ne.s32.totalorder %s124, %s126
    %p130 = scmp.eq.s32.totalorder %s13, 0
    %p131 = por %p129, %p130
    %p132 = scmp.ne.s32.totalorder %s124, %s126
    %p133 = scmp.eq.s32.totalorder %s18, 1
    %p134 = por %p132, %p133
    %p135 = scmp.ne.s32.totalorder %s126, %s127
    %p136 = scmp.eq.s32.totalorder %s18, 0
    %p137 = por %p135, %p136
    %p138 = scmp.ne.s32.totalorder %s126, %s127
    %p139 = scmp.eq.s32.totalorder %s19, 1
    %p140 = por %p138, %p139
    %p142 = scmp.ne.s32.totalorder %s127, %s141
    %p143 = scmp.eq.s32.totalorder %s19, 0
    %p144 = por %p142, %p143
    %s146 = sadd.s32 %s145, 1
    %p149 = scmp.eq.s32.totalorder %s13, 1
    %p150 = scmp.ne.s32.totalorder %s145, %s147
    %p151 = scmp.eq.s32.totalorder %s13, 0
    %p152 = por %p150, %p151
    %p153 = scmp.ne.s32.totalorder %s145, %s147
    %p154 = scmp.eq.s32.totalorder %s18, 1
    %p155 = por %p153, %p154
    %p156 = scmp.ne.s32.totalorder %s147, %s148
    %p157 = scmp.eq.s32.totalorder %s18, 0
    %p158 = por %p156, %p157
    %p159 = scmp.ne.s32.totalorder %s147, %s148
    %p160 = scmp.eq.s32.totalorder %s19, 1
    %p161 = por %p159, %p160
    %p163 = scmp.ne.s32.totalorder %s148, %s162
    %p164 = scmp.eq.s32.totalorder %s19, 0
    %p165 = por %p163, %p164
    %s167 = sadd.s32 %s166, 1
    %p170 = scmp.eq.s32.totalorder %s13, 1
    %p171 = scmp.ne.s32.totalorder %s166, %s168
    %p172 = scmp.eq.s32.totalorder %s13, 0
    %p173 = por %p171, %p172
    %p174 = scmp.ne.s32.totalorder %s166, %s168
    %p175 = scmp.eq.s32.totalorder %s18, 1
    %p176 = por %p174, %p175
    %p177 = scmp.ne.s32.totalorder %s168, %s169
    %p178 = scmp.eq.s32.totalorder %s18, 0
    %p179 = por %p177, %p178
    %p180 = scmp.ne.s32.totalorder %s168, %s169
    %p181 = scmp.eq.s32.totalorder %s19, 1
    %p182 = por %p180, %p181
    %p184 = scmp.ne.s32.totalorder %s169, %s183
    %p185 = scmp.eq.s32.totalorder %s19, 0
    %p186 = por %p184, %p185
    %s187 = ssub.s32 %s20, %s32
    %s188 = ssub.s32 %s21, %s28
    %s189 = sor.u32 %s187, %s188
    %p190 = scmp.eq.s32.totalorder %s189, 0
    %s192 = sadd.s32 %s191, 1
    %s193 = scalar_select %p190, %s191, %s192
    %p196 = pneg %p190
    %p197 = scmp.eq.s32.totalorder %s13, 1
    %p198 = por %p196, %p197
    %p199 = scmp.ne.s32.totalorder %s191, %s194
    %p200 = scmp.eq.s32.totalorder %s13, 0
    %p201 = por %p199, %p200
    %p202 = scmp.ne.s32.totalorder %s191, %s194
    %p203 = scmp.eq.s32.totalorder %s18, 1
    %p204 = por %p202, %p203
    %p205 = scmp.ne.s32.totalorder %s194, %s195
    %p206 = scmp.eq.s32.totalorder %s18, 0
    %p207 = por %p205, %p206
    %p208 = scmp.ne.s32.totalorder %s194, %s195
    %p209 = scmp.eq.s32.totalorder %s19, 1
    %p210 = por %p208, %p209
    %p212 = scmp.ne.s32.totalorder %s195, %s211
    %p213 = scmp.eq.s32.totalorder %s19, 0
    %p214 = por %p212, %p213
    %p215 = scmp.le.s32.totalorder 1, %s13
    %p216 = scmp.lt.s32.totalorder %s13, 3
    %p217 = pnand %p215, %p216
    %p218 = pneg %p217
    // Predicated region
    $region9: #{speech_postnet_forward.1} parent=5 // pred_check
      _
    $region10: #{speech_postnet_forward.1} parent=5 // pred_check_branch
      %220 = sbr.rel (%p217) target = $region12
    $region11: #{speech_postnet_forward.1} parent=5 // pred_region
      %s221 = ssub.s32 %s13, 1
      // Predicated region
      $region13: #{speech_postnet_forward.1} parent=11 // pred_check
        %p222 = pneg %p74
      $region14: #{speech_postnet_forward.1} parent=11 // pred_check_branch
        %224 = sbr.rel (%p222) target = $region16
      $region15: #{speech_postnet_forward.1} parent=11 // pred_region
        _
      $region16: #{speech_postnet_forward.1} parent=11 // pred_fallthru
        _
      // Predicated region
      $region17: #{speech_postnet_forward.1} parent=11 // pred_check
        %p225 = pneg %p95
      $region18: #{speech_postnet_forward.1} parent=11 // pred_check_branch
        %227 = sbr.rel (%p225) target = $region20
      $region19: #{speech_postnet_forward.1} parent=11 // pred_region
        _
      $region20: #{speech_postnet_forward.1} parent=11 // pred_fallthru
        _
      // Predicated region
      $region21: #{speech_postnet_forward.1} parent=11 // pred_check
        %p228 = pneg %p116
      $region22: #{speech_postnet_forward.1} parent=11 // pred_check_branch
        %230 = sbr.rel (%p228) target = $region24
      $region23: #{speech_postnet_forward.1} parent=11 // pred_region
        _
      $region24: #{speech_postnet_forward.1} parent=11 // pred_fallthru
        _
      // Predicated region
      $region25: #{speech_postnet_forward.1} parent=11 // pred_check
        %p231 = pneg %p137
      $region26: #{speech_postnet_forward.1} parent=11 // pred_check_branch
        %233 = sbr.rel (%p231) target = $region28
      $region27: #{speech_postnet_forward.1} parent=11 // pred_region
        _
      $region28: #{speech_postnet_forward.1} parent=11 // pred_fallthru
        _
      // Predicated region
      $region29: #{speech_postnet_forward.1} parent=11 // pred_check
        %p234 = pneg %p158
      $region30: #{speech_postnet_forward.1} parent=11 // pred_check_branch
        %236 = sbr.rel (%p234) target = $region32
      $region31: #{speech_postnet_forward.1} parent=11 // pred_region
        _
      $region32: #{speech_postnet_forward.1} parent=11 // pred_fallthru
        _
      // Predicated region
      $region33: #{speech_postnet_forward.1} parent=11 // pred_check
        %p237 = pneg %p179
      $region34: #{speech_postnet_forward.1} parent=11 // pred_check_branch
        %239 = sbr.rel (%p237) target = $region36
      $region35: #{speech_postnet_forward.1} parent=11 // pred_region
        _
      $region36: #{speech_postnet_forward.1} parent=11 // pred_fallthru
        _
    $region12: #{speech_postnet_forward.1} parent=5 // pred_fallthru
      _
    %p240 = scmp.lt.s32.totalorder %s13, 2
    // Predicated region
    $region37: #{speech_postnet_forward.1} parent=5 // pred_check
      %p241 = pneg %p240
    $region38: #{speech_postnet_forward.1} parent=5 // pred_check_branch
      %243 = sbr.rel (%p241) target = $region40
    $region39: #{speech_postnet_forward.1} parent=5 // pred_region
      // Predicated region
      $region41: #{speech_postnet_forward.1} parent=39 // pred_check
        %p244 = pneg %p47
      $region42: #{speech_postnet_forward.1} parent=39 // pred_check_branch
        %246 = sbr.rel (%p244) target = $region44
      $region43: #{speech_postnet_forward.1} parent=39 // pred_region
        %p247 = scmp.lt.s32.totalorder %s20, 1
        %s248 = scalar_select %p247, %s20, 1
        %p249 = scmp.lt.s32.totalorder %s21, 0
        %s250 = scalar_select %p249, %s21, 0
        %s251 = smul.addr %s250, 5
        %s252 = smul.addr %s248, 5
        %s253 = sadd.s32 %s251, %s252
        %s254 = smul.addr %s253, 4
        %s255 = scalar_lea.vmem %s0, %s254
      $region44: #{speech_postnet_forward.1} parent=39 // pred_fallthru
        _
    $region40: #{speech_postnet_forward.1} parent=5 // pred_fallthru
      _
    %p256 = scmp.le.s32.totalorder 1, %s13
    %p257 = scmp.lt.s32.totalorder %s13, 3
    %p258 = pnand %p256, %p257
    %p259 = pneg %p258
    // Predicated region
    $region45: #{speech_postnet_forward.1} parent=5 // pred_check
      _
    $region46: #{speech_postnet_forward.1} parent=5 // pred_check_branch
      %261 = sbr.rel (%p258) target = $region48
    $region47: #{speech_postnet_forward.1} parent=5 // pred_region
      %s262 = ssub.s32 %s13, 1
      %p263 = scmp.lt.s32.totalorder %s22, 1
      %s264 = scalar_select %p263, %s22, 1
      %p265 = scmp.lt.s32.totalorder %s23, 0
      %s266 = scalar_select %p265, %s23, 0
      %s267 = smul.addr %s266, 5
      %s268 = smul.addr %s264, 5
      %s269 = sadd.s32 %s267, %s268
      %s270 = smul.addr %s269, 4
      %s271 = scalar_lea.vmem %s0, %s270
      %p272 = pneg %p53
      %p273 = pneg %p50
      %p274 = pneg %p74
      %p275 = pneg %p71
      %p276 = pneg %p95
      %p277 = pneg %p92
      %p278 = pneg %p116
      %p279 = pneg %p113
      %p280 = pneg %p137
      %p281 = pneg %p134
      %p282 = pneg %p158
      %p283 = pneg %p155
      %p284 = pneg %p179
      %p285 = pneg %p176
      %p286 = pneg %p207
      %p287 = pneg %p204
      %s288 = smul.u32 2, %s23
      %p289 = scmp.lt.s32.totalorder %s22, 1
      %s290 = scalar_select %p289, %s22, 1
      %p291 = scmp.lt.s32.totalorder %s288, 1
      %s292 = scalar_select %p291, %s288, 1
      %s293 = smul.addr %s290, 2
      %s294 = sadd.s32 %s292, %s293
      %s295 = smul.addr %s294, 8
      %s296 = scalar_lea.vmem %s7, %s295
      %p297 = scmp.lt.s32.totalorder %s22, 1
      %s298 = scalar_select %p297, %s22, 1
      %p299 = scmp.lt.s32.totalorder %s23, 0
      %s300 = scalar_select %p299, %s23, 0
      %s301 = smul.addr %s300, 5
      %s302 = smul.addr %s298, 5
      %s303 = sadd.s32 %s301, %s302
      %s304 = smul.addr %s303, 4
      %s305 = scalar_lea.vmem %s0, %s304
      %s306 = smul.u32 2, %s23
      %p307 = scmp.lt.s32.totalorder %s22, 1
      %s308 = scalar_select %p307, %s22, 1
      %p309 = scmp.lt.s32.totalorder %s306, 1
      %s310 = scalar_select %p309, %s306, 1
      %s311 = smul.addr %s308, 2
      %s312 = sadd.s32 %s310, %s311
      %s313 = smul.addr %s312, 8
      %s314 = scalar_lea.vmem %s7, %s313
      %s315 = smul.u32 2, %s23
      %v317 = vld [vmem:[%s305] sm:$0xf]
      %v318 = vld [vmem:[%s305 + $0x4] sm:$0xf]
      %v319 = vld [vmem:[%s305 + $0x8] sm:$0xf]
      %v320 = vld [vmem:[%s305 + $0xc] sm:$0xf]
      %v321 = vld [vmem:[%s305 + $0x10] sm:$0x3]
      %v326 = vunpack.c.l.b16 %v317
      %v327 = vunpack.c.l.b16 %v318
      %v328 = vunpack.c.l.b16 %v319
      %v329 = vunpack.c.l.b16 %v320
      %v330 = vpack.c.b16 %v327, %v326
      %v331 = vpack.c.b16 %v329, %v328
      %v333 = vunpack.c.l.b16 %v321
      %v334 = vpack.c.b16 %v333, %v333
      %vm335 = vsmask.f32 7424
      %v337 = vshrl.u32 %v330, 16
      %v339 = vshll.u32 %v330, 16
      %v341 = vrot.slane %v339, 1
      %v342 = vor.u32 %v337, %v341
      %v344 = vshll.u32 %v331, 16
      %v346 = vrot.slane %v344, 1
      %v347 = vsel %vm335, %v342, %v346
      %v348 = vshrl.u32 %v331, 16
      %v350 = vor.u32 %v348, %v346
      %v352 = vshll.u32 %v334, 16
      %v354 = vrot.slane %v352, 1
      %v355 = vsel %vm335, %v350, %v354
      %356 = vrot.lane.b32.xlu0 %v347, 8
      %v357 = vpop.permute.xlu0 %356
      %358 = vrot.lane.b32.xlu0 %v355, 8
      %v359 = vpop.permute.xlu0 %358
      %vm360 = vcmask 1046528
      %v361 = vrot.slane %v330, 1
      %v362 = vrot.slane %v331, 1
      %v363 = vsel %vm360, %v361, %v362
      %v364 = vrot.slane %v334, 1
      %v365 = vsel %vm360, %v362, %v364
      %366 = vrot.lane.b32.xlu0 %v363, 16
      %v367 = vpop.permute.xlu0 %366
      %368 = vrot.lane.b32.xlu0 %v365, 16
      %v369 = vpop.permute.xlu0 %368
      %vm370 = vsmask.f32 6400
      %v371 = vrot.slane %v337, 1
      %v372 = vrot.slane %v339, 2
      %v373 = vor.u32 %v371, %v372
      %v374 = vrot.slane %v348, 1
      %v375 = vrot.slane %v344, 2
      %v376 = vor.u32 %v374, %v375
      %v377 = vsel %vm370, %v373, %v376
      %v378 = vshrl.u32 %v334, 16
      %v380 = vrot.slane %v378, 1
      %v381 = vrot.slane %v352, 2
      %v382 = vor.u32 %v380, %v381
      %v383 = vsel %vm370, %v376, %v382
      %384 = vrot.lane.b32.xlu0 %v377, 24
      %v385 = vpop.permute.xlu0 %384
      %386 = vrot.lane.b32.xlu0 %v383, 24
      %v387 = vpop.permute.xlu0 %386
      %vm388 = vcmask 1045504
      %v389 = vrot.slane %v330, 2
      %v390 = vrot.slane %v331, 2
      %v391 = vsel %vm388, %v389, %v390
      %v392 = vrot.slane %v334, 2
      %v393 = vsel %vm388, %v390, %v392
      %394 = vrot.lane.b32.xlu0 %v391, 32
      %v395 = vpop.permute.xlu0 %394
      %396 = vrot.lane.b32.xlu0 %v393, 32
      %v397 = vpop.permute.xlu0 %396
      %vm398 = vcmask 64512
      %v400 = vsel %vm398, %v330, %v357
      %v402 = vsel %vm398, %v331, %v359
      %vm403 = vcmask 130048
      %v405 = vsel %vm403, %v400, %v367
      %v407 = vsel %vm403, %v402, %v369
      %vm408 = vcmask 195584
      %v410 = vsel %vm408, %v405, %v385
      %v412 = vsel %vm408, %v407, %v387
      %vm413 = vcmask 261120
      %v415 = vsel %vm413, %v410, %v395
      %v417 = vsel %vm413, %v412, %v397
      %v418 = vld [vmem:[%s1] sm:$0xf]
      %v419 = vld [vmem:[%s1 + $0x4] sm:$0xf]
      %v420 = vld [vmem:[%s1 + $0x8] sm:$0xf]
      %v421 = vld [vmem:[%s1 + $0xc] sm:$0xf]
      %v422 = vld [vmem:[%s1 + $0x10] sm:$0xf]
      %v423 = vld [vmem:[%s4] sm:$0x1]
      %v425 = vlaneseq
      %v426 = vshrl.u32 %v425, 7
      %v427 = vsub.s32 0, %v426
      %v428 = vrot.slane %v423, %v427
      %v435 = vunpack.c.l.b16 %v418
      %v436 = vunpack.c.l.b16 %v419
      %v437 = vunpack.c.l.b16 %v420
      %v438 = vunpack.c.l.b16 %v421
      %v439 = vunpack.c.l.b16 %v422
      %v440 = vpack.c.b16 %v436, %v435
      %v441 = vpack.c.b16 %v438, %v437
      %v442 = vpack.c.b16 %v439, %v439
      %vm445 = vcmask 326656
      %v446 = vsel %vm445, %v415, 0
      %v448 = vsel %vm445, %v417, 0
      %vm450 = vcmask 1043456
      %v452 = vsel %vm450, %v442, 0
      %454 = vmatprep.subr.bf16.mxu0 0
      %455 = vmatpush1.bf16.msra.mxu0 0
      %456 = vmatprep.subr.bf16.mxu0 0
      %457 = vmatpush1.bf16.msra.mxu0 0
      %458 = vmatprep.subr.bf16.mxu0 0
      %459 = vmatpush1.bf16.msra.mxu0 0
      %460 = vmatprep.subr.bf16.mxu0 0
      %461 = vmatpush1.bf16.msra.mxu0 0
      %462 = vmatprep.subr.bf16.mxu0 0
      %463 = vmatpush1.bf16.msra.mxu0 0
      %464 = vmatprep.subr.bf16.mxu0 0
      %465 = vmatpush1.bf16.msra.mxu0 %v452
      %466 = vmatprep.subr.bf16.mxu0 0
      %467 = vmatpush1.bf16.msra.mxu0 %v441
      %468 = vmatprep.subr.bf16.mxu0 0
      %469 = vmatpush1.bf16.msra.mxu0 %v440
      %470 = vmatprep.subr.bf16.mxu0 0
      %471 = vmatpush2.bf16.msra.mxu0 0
      %472 = vmatprep.subr.bf16.mxu0 0
      %473 = vmatpush2.bf16.msra.mxu0 0
      %474 = vmatprep.subr.bf16.mxu0 0
      %475 = vmatpush2.bf16.msra.mxu0 0
      %476 = vmatprep.subr.bf16.mxu0 0
      %477 = vmatpush2.bf16.msra.mxu0 0
      %478 = vmatprep.subr.bf16.mxu0 0
      %479 = vmatpush2.bf16.msra.mxu0 0
      %480 = vmatprep.subr.bf16.mxu0 0
      %481 = vmatpush2.bf16.msra.mxu0 0
      %482 = vmatprep.subr.bf16.mxu0 0
      %483 = vmatpush2.bf16.msra.mxu0 0
      %484 = vmatprep.subr.bf16.mxu0 0
      %485 = vmatpush2.bf16.msra.mxu0 0
      %486 = vmatprep.mubr.bf16.mxu0 0
      %487 = vmatmul.mubr.bf16.gmra.mxu0 %v446
      %v488 = vpop.f32.mrf.mxu0
      %v489 = vadd.f32 %v428, %v488
      %v490 = vpop.f32.mrf.mxu0
      %v491 = vpop.f32.mrf.mxu0
      %v492 = vadd.f32 %v428, %v491
      %v493 = vpop.f32.mrf.mxu0
      %494 = vmatprep.mubr.bf16.mxu0 0
      %495 = vmatmul.mubr.bf16.gmra.mxu0 %v448
      %v496 = vpop.f32.mrf.mxu0
      %v497 = vadd.f32 %v428, %v496
      %v498 = vpop.f32.mrf.mxu0
      %v499 = vpop.f32.mrf.mxu0
      %v500 = vadd.f32 %v428, %v499
      %v501 = vpop.f32.mrf.mxu0
      %502 = vdwg.mxu0
      %v503 = vtanh.pop %v489
      %v504 = vtanh.pop %v492
      %v505 = vtanh.pop %v497
      %v506 = vtanh.pop %v500
      %v507 = vlaneseq
      %v508 = vshrl.u32 %v507, 7
      %v509 = vadd.s32 %v508, 8
      %v510 = vadd.s32 %v508, 16
      %v511 = vadd.s32 %v508, 24
      %p512 = scmp.gt.s32.totalorder %s23, 0
      %vm513 = vcmp.ge.s32.totalorder %v508, 16
      %vm514 = vcmp.ge.s32.totalorder %v509, 16
      %vm515 = vcmp.ge.s32.totalorder %v510, 16
      %vm516 = vcmp.ge.s32.totalorder %v511, 16
      %s517 = scalar_select %p512, 1, 0
      %v518 = vstv %s517
      %vm519 = vcmp.eq.s32.totalorder %v518, 1
      %vm520 = vmor %vm519, %vm513
      %vm521 = vmor %vm519, %vm514
      %vm522 = vmor %vm519, %vm515
      %vm523 = vmor %vm519, %vm516
      %v524 = vsel %vm520, 1, 0
      %v525 = vsel %vm521, 1, 0
      %v526 = vsel %vm522, 1, 0
      %v527 = vsel %vm523, 1, 0
      %vm528 = vcmp.eq.s32.totalorder %v524, 1
      %vm529 = vcmp.eq.s32.totalorder %v525, 1
      %vm530 = vcmp.eq.s32.totalorder %v526, 1
      %vm531 = vcmp.eq.s32.totalorder %v527, 1
      %v532 = vsel %vm528, %v503, 0.0
      %v533 = vsel %vm529, %v504, 0.0
      %v534 = vsel %vm530, %v505, 0.0
      %v535 = vsel %vm531, %v506, 0.0
      %v536 = vpack.c.bf16 %v533, %v532
      %v537 = vpack.c.bf16 %v535, %v534
      %v540 = vunpack.c.l.b16 %v536
      %v541 = vunpack.c.h.b16 %v536
      %v542 = vunpack.c.l.b16 %v537
      %v543 = vunpack.c.h.b16 %v537
      %v544 = vpack.c.b16 %v540, %v540
      %v545 = vpack.c.b16 %v541, %v541
      %v546 = vpack.c.b16 %v542, %v542
      %v547 = vpack.c.b16 %v543, %v543
      %vm552 = vcmask 257024
      %553 = vst.msk [vmem:[#allocation2] sm:$0xf] %vm552, %v544
      %554 = vst.msk [vmem:[#allocation2 + $0x4] sm:$0xf] %vm552, %v545
      %555 = vst.msk [vmem:[#allocation2 + $0x8] sm:$0xf] %vm552, %v546
      %556 = vst.msk [vmem:[#allocation2 + $0xc] sm:$0xf] %vm552, %v547
      %v557 = vld [vmem:[#allocation2] sm:$0xf]
      %v558 = vld [vmem:[#allocation2 + $0x4] sm:$0xf]
      %v559 = vld [vmem:[#allocation2 + $0x8] sm:$0xf]
      %v560 = vld [vmem:[#allocation2 + $0xc] sm:$0x3]
      %v561 = vld [vmem:[%s2] sm:$0xf]
      %v562 = vld [vmem:[%s2 + $0x4] sm:$0xf]
      %v563 = vld [vmem:[%s2 + $0x8] sm:$0xf]
      %v564 = vld [vmem:[%s2 + $0xc] sm:$0xf]
      %v565 = vld [vmem:[#allocation2 + $0xc] sm:$0x7]
      %s566 = scalar_lea.vmem %s2, 16
      %v567 = vld [vmem:[%s566] sm:$0xf]
      %v568 = vld [vmem:[%s566 + $0x4] sm:$0xf]
      %v569 = vld [vmem:[%s566 + $0x8] sm:$0xf]
      %v570 = vld [vmem:[%s566 + $0xc] sm:$0xf]
      %v575 = vunpack.c.l.b16 %v557
      %v576 = vunpack.c.l.b16 %v558
      %v577 = vunpack.c.l.b16 %v559
      %v578 = vunpack.c.l.b16 %v565
      %v579 = vpack.c.b16 %v576, %v575
      %v580 = vpack.c.b16 %v578, %v577
      %v582 = vshrl.u32 %v579, 16
      %v584 = vshll.u32 %v579, 16
      %v586 = vrot.slane %v584, 1
      %v587 = vor.u32 %v582, %v586
      %v589 = vshll.u32 %v580, 16
      %v591 = vrot.slane %v589, 1
      %v592 = vsel %vm335, %v587, %v591
      %v593 = vshrl.u32 %v580, 16
      %v595 = vor.u32 %v593, %v591
      %v600 = vunpack.c.l.b16 %v567
      %v601 = vunpack.c.l.b16 %v568
      %v602 = vunpack.c.l.b16 %v569
      %v603 = vunpack.c.l.b16 %v570
      %v604 = vpack.c.b16 %v601, %v600
      %v605 = vpack.c.b16 %v603, %v602
      %v609 = vsel %vm413, %v592, 0
      %v612 = vsel %vm413, %v595, 0
      %614 = vmatprep.subr.bf16.mxu0 0
      %615 = vmatpush1.bf16.msra.mxu0 0
      %616 = vmatprep.subr.bf16.mxu0 0
      %617 = vmatpush1.bf16.msra.mxu0 0
      %618 = vmatprep.subr.bf16.mxu0 0
      %619 = vmatpush1.bf16.msra.mxu0 0
      %620 = vmatprep.subr.bf16.mxu0 0
      %621 = vmatpush1.bf16.msra.mxu0 0
      %622 = vmatprep.subr.bf16.mxu0 0
      %623 = vmatpush1.bf16.msra.mxu0 0
      %624 = vmatprep.subr.bf16.mxu0 0
      %625 = vmatpush1.bf16.msra.mxu0 0
      %626 = vmatprep.subr.bf16.mxu0 0
      %627 = vmatpush1.bf16.msra.mxu0 %v605
      %628 = vmatprep.subr.bf16.mxu0 0
      %629 = vmatpush1.bf16.msra.mxu0 %v604
      %630 = vmatprep.subr.bf16.mxu0 0
      %631 = vmatpush2.bf16.msra.mxu0 0
      %632 = vmatprep.subr.bf16.mxu0 0
      %633 = vmatpush2.bf16.msra.mxu0 0
      %634 = vmatprep.subr.bf16.mxu0 0
      %635 = vmatpush2.bf16.msra.mxu0 0
      %636 = vmatprep.subr.bf16.mxu0 0
      %637 = vmatpush2.bf16.msra.mxu0 0
      %638 = vmatprep.subr.bf16.mxu0 0
      %639 = vmatpush2.bf16.msra.mxu0 0
      %640 = vmatprep.subr.bf16.mxu0 0
      %641 = vmatpush2.bf16.msra.mxu0 0
      %642 = vmatprep.subr.bf16.mxu0 0
      %643 = vmatpush2.bf16.msra.mxu0 0
      %644 = vmatprep.subr.bf16.mxu0 0
      %645 = vmatpush2.bf16.msra.mxu0 0
      %646 = vmatprep.mubr.bf16.mxu0 0
      %647 = vmatmul.mubr.bf16.gmra.mxu0 %v609
      %v648 = vpop.f32.mrf.mxu0
      %v649 = vadd.f32 0.0, %v648
      %v650 = vpop.f32.mrf.mxu0
      %v651 = vpop.f32.mrf.mxu0
      %v652 = vadd.f32 0.0, %v651
      %v653 = vpop.f32.mrf.mxu0
      %654 = vmatprep.mubr.bf16.mxu0 0
      %655 = vmatmul.mubr.bf16.gmra.mxu0 %v612
      %v656 = vpop.f32.mrf.mxu0
      %v657 = vadd.f32 0.0, %v656
      %v658 = vpop.f32.mrf.mxu0
      %v659 = vpop.f32.mrf.mxu0
      %v660 = vadd.f32 0.0, %v659
      %v661 = vpop.f32.mrf.mxu0
      %662 = vdwg.mxu0
      %v664 = vunpack.c.l.b16 %v560
      %v665 = vpack.c.b16 %v664, %v577
      %v670 = vunpack.c.l.b16 %v561
      %v671 = vunpack.c.l.b16 %v562
      %v672 = vunpack.c.l.b16 %v563
      %v673 = vunpack.c.l.b16 %v564
      %v674 = vpack.c.b16 %v671, %v670
      %v675 = vpack.c.b16 %v673, %v672
      %v678 = vsel %vm413, %v579, 0
      %v681 = vsel %vm413, %v665, 0
      %683 = vmatprep.subr.bf16.mxu0 0
      %684 = vmatpush1.bf16.msra.mxu0 0
      %685 = vmatprep.subr.bf16.mxu0 0
      %686 = vmatpush1.bf16.msra.mxu0 0
      %687 = vmatprep.subr.bf16.mxu0 0
      %688 = vmatpush1.bf16.msra.mxu0 0
      %689 = vmatprep.subr.bf16.mxu0 0
      %690 = vmatpush1.bf16.msra.mxu0 0
      %691 = vmatprep.subr.bf16.mxu0 0
      %692 = vmatpush1.bf16.msra.mxu0 0
      %693 = vmatprep.subr.bf16.mxu0 0
      %694 = vmatpush1.bf16.msra.mxu0 0
      %695 = vmatprep.subr.bf16.mxu0 0
      %696 = vmatpush1.bf16.msra.mxu0 %v675
      %697 = vmatprep.subr.bf16.mxu0 0
      %698 = vmatpush1.bf16.msra.mxu0 %v674
      %699 = vmatprep.subr.bf16.mxu0 0
      %700 = vmatpush2.bf16.msra.mxu0 0
      %701 = vmatprep.subr.bf16.mxu0 0
      %702 = vmatpush2.bf16.msra.mxu0 0
      %703 = vmatprep.subr.bf16.mxu0 0
      %704 = vmatpush2.bf16.msra.mxu0 0
      %705 = vmatprep.subr.bf16.mxu0 0
      %706 = vmatpush2.bf16.msra.mxu0 0
      %707 = vmatprep.subr.bf16.mxu0 0
      %708 = vmatpush2.bf16.msra.mxu0 0
      %709 = vmatprep.subr.bf16.mxu0 0
      %710 = vmatpush2.bf16.msra.mxu0 0
      %711 = vmatprep.subr.bf16.mxu0 0
      %712 = vmatpush2.bf16.msra.mxu0 0
      %713 = vmatprep.subr.bf16.mxu0 0
      %714 = vmatpush2.bf16.msra.mxu0 0
      %715 = vmatprep.mubr.bf16.mxu0 0
      %716 = vmatmul.mubr.bf16.gmra.mxu0 %v678
      %v717 = vpop.f32.mrf.mxu0
      %v718 = vadd.f32 %v649, %v717
      %v719 = vpop.f32.mrf.mxu0
      %v720 = vpop.f32.mrf.mxu0
      %v721 = vadd.f32 %v652, %v720
      %v722 = vpop.f32.mrf.mxu0
      %723 = vmatprep.mubr.bf16.mxu0 0
      %724 = vmatmul.mubr.bf16.gmra.mxu0 %v681
      %v725 = vpop.f32.mrf.mxu0
      %v726 = vadd.f32 %v657, %v725
      %v727 = vpop.f32.mrf.mxu0
      %v728 = vpop.f32.mrf.mxu0
      %v729 = vadd.f32 %v660, %v728
      %v730 = vpop.f32.mrf.mxu0
      %731 = vdwg.mxu0
      %v732 = vld [vmem:[#allocation2] sm:$0xe]
      %s733 = scalar_lea.vmem %s2, 32
      %v734 = vld [vmem:[%s733] sm:$0xf]
      %v735 = vld [vmem:[%s733 + $0x4] sm:$0xf]
      %v736 = vld [vmem:[%s733 + $0x8] sm:$0xf]
      %v737 = vld [vmem:[%s733 + $0xc] sm:$0xf]
      %v739 = vunpack.c.l.b16 %v732
      %v740 = vpack.c.b16 %v576, %v739
      %v741 = vrot.slane %v740, 1
      %v742 = vrot.slane %v580, 1
      %v743 = vsel %vm360, %v741, %v742
      %v748 = vunpack.c.l.b16 %v734
      %v749 = vunpack.c.l.b16 %v735
      %v750 = vunpack.c.l.b16 %v736
      %v751 = vunpack.c.l.b16 %v737
      %v752 = vpack.c.b16 %v749, %v748
      %v753 = vpack.c.b16 %v751, %v750
      %v757 = vsel %vm413, %v743, 0
      %v760 = vsel %vm413, %v742, 0
      %762 = vmatprep.subr.bf16.mxu0 0
      %763 = vmatpush1.bf16.msra.mxu0 0
      %764 = vmatprep.subr.bf16.mxu0 0
      %765 = vmatpush1.bf16.msra.mxu0 0
      %766 = vmatprep.subr.bf16.mxu0 0
      %767 = vmatpush1.bf16.msra.mxu0 0
      %768 = vmatprep.subr.bf16.mxu0 0
      %769 = vmatpush1.bf16.msra.mxu0 0
      %770 = vmatprep.subr.bf16.mxu0 0
      %771 = vmatpush1.bf16.msra.mxu0 0
      %772 = vmatprep.subr.bf16.mxu0 0
      %773 = vmatpush1.bf16.msra.mxu0 0
      %774 = vmatprep.subr.bf16.mxu0 0
      %775 = vmatpush1.bf16.msra.mxu0 %v753
      %776 = vmatprep.subr.bf16.mxu0 0
      %777 = vmatpush1.bf16.msra.mxu0 %v752
      %778 = vmatprep.subr.bf16.mxu0 0
      %779 = vmatpush2.bf16.msra.mxu0 0
      %780 = vmatprep.subr.bf16.mxu0 0
      %781 = vmatpush2.bf16.msra.mxu0 0
      %782 = vmatprep.subr.bf16.mxu0 0
      %783 = vmatpush2.bf16.msra.mxu0 0
      %784 = vmatprep.subr.bf16.mxu0 0
      %785 = vmatpush2.bf16.msra.mxu0 0
      %786 = vmatprep.subr.bf16.mxu0 0
      %787 = vmatpush2.bf16.msra.mxu0 0
      %788 = vmatprep.subr.bf16.mxu0 0
      %789 = vmatpush2.bf16.msra.mxu0 0
      %790 = vmatprep.subr.bf16.mxu0 0
      %791 = vmatpush2.bf16.msra.mxu0 0
      %792 = vmatprep.subr.bf16.mxu0 0
      %793 = vmatpush2.bf16.msra.mxu0 0
      %794 = vmatprep.mubr.bf16.mxu0 0
      %795 = vmatmul.mubr.bf16.gmra.mxu0 %v757
      %v796 = vpop.f32.mrf.mxu0
      %v797 = vadd.f32 0.0, %v796
      %v798 = vpop.f32.mrf.mxu0
      %v799 = vpop.f32.mrf.mxu0
      %v800 = vadd.f32 0.0, %v799
      %v801 = vpop.f32.mrf.mxu0
      %802 = vmatprep.mubr.bf16.mxu0 0
      %803 = vmatmul.mubr.bf16.gmra.mxu0 %v760
      %v804 = vpop.f32.mrf.mxu0
      %v805 = vadd.f32 0.0, %v804
      %v806 = vpop.f32.mrf.mxu0
      %v807 = vpop.f32.mrf.mxu0
      %v808 = vadd.f32 0.0, %v807
      %v809 = vpop.f32.mrf.mxu0
      %810 = vdwg.mxu0
      %v811 = vadd.f32 %v718, %v797
      %v812 = vadd.f32 %v721, %v800
      %v813 = vadd.f32 %v726, %v805
      %v814 = vadd.f32 %v729, %v808
      %v815 = vld [vmem:[#allocation2 + $0xc] sm:$0xf]
      %s816 = scalar_lea.vmem %s2, 48
      %v817 = vld [vmem:[%s816] sm:$0xf]
      %v818 = vld [vmem:[%s816 + $0x4] sm:$0xf]
      %v819 = vld [vmem:[%s816 + $0x8] sm:$0xf]
      %v820 = vld [vmem:[%s816 + $0xc] sm:$0xf]
      %v822 = vunpack.c.l.b16 %v815
      %v823 = vpack.c.b16 %v822, %v577
      %v825 = vshrl.u32 %v740, 16
      %v827 = vrot.slane %v825, 1
      %v828 = vshll.u32 %v740, 16
      %v830 = vrot.slane %v828, 2
      %v831 = vor.u32 %v827, %v830
      %v833 = vshrl.u32 %v823, 16
      %v835 = vrot.slane %v833, 1
      %v836 = vshll.u32 %v823, 16
      %v838 = vrot.slane %v836, 2
      %v839 = vor.u32 %v835, %v838
      %v840 = vsel %vm370, %v831, %v839
      %v845 = vunpack.c.l.b16 %v817
      %v846 = vunpack.c.l.b16 %v818
      %v847 = vunpack.c.l.b16 %v819
      %v848 = vunpack.c.l.b16 %v820
      %v849 = vpack.c.b16 %v846, %v845
      %v850 = vpack.c.b16 %v848, %v847
      %v854 = vsel %vm413, %v840, 0
      %v857 = vsel %vm413, %v839, 0
      %859 = vmatprep.subr.bf16.mxu0 0
      %860 = vmatpush1.bf16.msra.mxu0 0
      %861 = vmatprep.subr.bf16.mxu0 0
      %862 = vmatpush1.bf16.msra.mxu0 0
      %863 = vmatprep.subr.bf16.mxu0 0
      %864 = vmatpush1.bf16.msra.mxu0 0
      %865 = vmatprep.subr.bf16.mxu0 0
      %866 = vmatpush1.bf16.msra.mxu0 0
      %867 = vmatprep.subr.bf16.mxu0 0
      %868 = vmatpush1.bf16.msra.mxu0 0
      %869 = vmatprep.subr.bf16.mxu0 0
      %870 = vmatpush1.bf16.msra.mxu0 0
      %871 = vmatprep.subr.bf16.mxu0 0
      %872 = vmatpush1.bf16.msra.mxu0 %v850
      %873 = vmatprep.subr.bf16.mxu0 0
      %874 = vmatpush1.bf16.msra.mxu0 %v849
      %875 = vmatprep.subr.bf16.mxu0 0
      %876 = vmatpush2.bf16.msra.mxu0 0
      %877 = vmatprep.subr.bf16.mxu0 0
      %878 = vmatpush2.bf16.msra.mxu0 0
      %879 = vmatprep.subr.bf16.mxu0 0
      %880 = vmatpush2.bf16.msra.mxu0 0
      %881 = vmatprep.subr.bf16.mxu0 0
      %882 = vmatpush2.bf16.msra.mxu0 0
      %883 = vmatprep.subr.bf16.mxu0 0
      %884 = vmatpush2.bf16.msra.mxu0 0
      %885 = vmatprep.subr.bf16.mxu0 0
      %886 = vmatpush2.bf16.msra.mxu0 0
      %887 = vmatprep.subr.bf16.mxu0 0
      %888 = vmatpush2.bf16.msra.mxu0 0
      %889 = vmatprep.subr.bf16.mxu0 0
      %890 = vmatpush2.bf16.msra.mxu0 0
      %891 = vmatprep.mubr.bf16.mxu0 0
      %892 = vmatmul.mubr.bf16.gmra.mxu0 %v854
      %v893 = vpop.f32.mrf.mxu0
      %v894 = vadd.f32 0.0, %v893
      %v895 = vpop.f32.mrf.mxu0
      %v896 = vpop.f32.mrf.mxu0
      %v897 = vadd.f32 0.0, %v896
      %v898 = vpop.f32.mrf.mxu0
      %899 = vmatprep.mubr.bf16.mxu0 0
      %900 = vmatmul.mubr.bf16.gmra.mxu0 %v857
      %v901 = vpop.f32.mrf.mxu0
      %v902 = vadd.f32 0.0, %v901
      %v903 = vpop.f32.mrf.mxu0
      %v904 = vpop.f32.mrf.mxu0
      %v905 = vadd.f32 0.0, %v904
      %v906 = vpop.f32.mrf.mxu0
      %907 = vdwg.mxu0
      %v908 = vadd.f32 %v811, %v894
      %v909 = vadd.f32 %v812, %v897
      %v910 = vadd.f32 %v813, %v902
      %v911 = vadd.f32 %v814, %v905
      %v912 = vld [vmem:[#allocation2] sm:$0xc]
      %s913 = scalar_lea.vmem %s2, 64
      %v914 = vld [vmem:[%s913] sm:$0xf]
      %v915 = vld [vmem:[%s913 + $0x4] sm:$0xf]
      %v916 = vld [vmem:[%s913 + $0x8] sm:$0xf]
      %v917 = vld [vmem:[%s913 + $0xc] sm:$0xf]
      %v919 = vunpack.c.l.b16 %v912
      %v920 = vpack.c.b16 %v576, %v919
      %v921 = vrot.slane %v920, 2
      %v922 = vrot.slane %v823, 2
      %v923 = vsel %vm388, %v921, %v922
      %v928 = vunpack.c.l.b16 %v914
      %v929 = vunpack.c.l.b16 %v915
      %v930 = vunpack.c.l.b16 %v916
      %v931 = vunpack.c.l.b16 %v917
      %v932 = vpack.c.b16 %v929, %v928
      %v933 = vpack.c.b16 %v931, %v930
      %v937 = vsel %vm413, %v923, 0
      %v940 = vsel %vm413, %v922, 0
      %942 = vmatprep.subr.bf16.mxu0 0
      %943 = vmatpush1.bf16.msra.mxu0 0
      %944 = vmatprep.subr.bf16.mxu0 0
      %945 = vmatpush1.bf16.msra.mxu0 0
      %946 = vmatprep.subr.bf16.mxu0 0
      %947 = vmatpush1.bf16.msra.mxu0 0
      %948 = vmatprep.subr.bf16.mxu0 0
      %949 = vmatpush1.bf16.msra.mxu0 0
      %950 = vmatprep.subr.bf16.mxu0 0
      %951 = vmatpush1.bf16.msra.mxu0 0
      %952 = vmatprep.subr.bf16.mxu0 0
      %953 = vmatpush1.bf16.msra.mxu0 0
      %954 = vmatprep.subr.bf16.mxu0 0
      %955 = vmatpush1.bf16.msra.mxu0 %v933
      %956 = vmatprep.subr.bf16.mxu0 0
      %957 = vmatpush1.bf16.msra.mxu0 %v932
      %958 = vmatprep.subr.bf16.mxu0 0
      %959 = vmatpush2.bf16.msra.mxu0 0
      %960 = vmatprep.subr.bf16.mxu0 0
      %961 = vmatpush2.bf16.msra.mxu0 0
      %962 = vmatprep.subr.bf16.mxu0 0
      %963 = vmatpush2.bf16.msra.mxu0 0
      %964 = vmatprep.subr.bf16.mxu0 0
      %965 = vmatpush2.bf16.msra.mxu0 0
      %966 = vmatprep.subr.bf16.mxu0 0
      %967 = vmatpush2.bf16.msra.mxu0 0
      %968 = vmatprep.subr.bf16.mxu0 0
      %969 = vmatpush2.bf16.msra.mxu0 0
      %970 = vmatprep.subr.bf16.mxu0 0
      %971 = vmatpush2.bf16.msra.mxu0 0
      %972 = vmatprep.subr.bf16.mxu0 0
      %973 = vmatpush2.bf16.msra.mxu0 0
      %974 = vmatprep.mubr.bf16.mxu0 0
      %975 = vmatmul.mubr.bf16.gmra.mxu0 %v937
      %v976 = vpop.f32.mrf.mxu0
      %v977 = vadd.f32 0.0, %v976
      %v978 = vpop.f32.mrf.mxu0
      %v979 = vpop.f32.mrf.mxu0
      %v980 = vadd.f32 0.0, %v979
      %v981 = vpop.f32.mrf.mxu0
      %982 = vmatprep.mubr.bf16.mxu0 0
      %983 = vmatmul.mubr.bf16.gmra.mxu0 %v940
      %v984 = vpop.f32.mrf.mxu0
      %v985 = vadd.f32 0.0, %v984
      %v986 = vpop.f32.mrf.mxu0
      %v987 = vpop.f32.mrf.mxu0
      %v988 = vadd.f32 0.0, %v987
      %v989 = vpop.f32.mrf.mxu0
      %990 = vdwg.mxu0
      %v991 = vadd.f32 %v908, %v977
      %v992 = vadd.f32 %v909, %v980
      %v993 = vadd.f32 %v910, %v985
      %v994 = vadd.f32 %v911, %v988
      %v995 = vld [vmem:[%s5] sm:$0x1]
      %v996 = vlaneseq
      %v997 = vshrl.u32 %v996, 7
      %v998 = vsub.s32 0, %v997
      %v999 = vrot.slane %v995, %v998
      %v1000 = vadd.f32 %v991, %v999
      %v1001 = vadd.f32 %v992, %v999
      %v1002 = vadd.f32 %v993, %v999
      %v1003 = vadd.f32 %v994, %v999
      %v1004 = vtanh.pop %v1000
      %v1005 = vtanh.pop %v1001
      %v1006 = vtanh.pop %v1002
      %v1007 = vtanh.pop %v1003
      %vm1008 = vcmp.ge.s32.totalorder %v508, 12
      %vm1009 = vcmp.ge.s32.totalorder %v509, 12
      %vm1010 = vcmp.ge.s32.totalorder %v510, 12
      %vm1011 = vcmp.ge.s32.totalorder %v511, 12
      %vm1012 = vmor %vm519, %vm1008
      %vm1013 = vmor %vm519, %vm1009
      %vm1014 = vmor %vm519, %vm1010
      %vm1015 = vmor %vm519, %vm1011
      %v1016 = vsel %vm1012, 1, 0
      %v1017 = vsel %vm1013, 1, 0
      %v1018 = vsel %vm1014, 1, 0
      %v1019 = vsel %vm1015, 1, 0
      %vm1020 = vcmp.eq.s32.totalorder %v1016, 1
      %vm1021 = vcmp.eq.s32.totalorder %v1017, 1
      %vm1022 = vcmp.eq.s32.totalorder %v1018, 1
      %vm1023 = vcmp.eq.s32.totalorder %v1019, 1
      %v1024 = vsel %vm1020, %v1004, 0.0
      %v1025 = vsel %vm1021, %v1005, 0.0
      %v1026 = vsel %vm1022, %v1006, 0.0
      %v1027 = vsel %vm1023, %v1007, 0.0
      %v1028 = vpack.c.bf16 %v1025, %v1024
      %v1029 = vpack.c.bf16 %v1027, %v1026
      %v1032 = vunpack.c.l.b16 %v1028
      %v1033 = vunpack.c.h.b16 %v1028
      %v1034 = vunpack.c.l.b16 %v1029
      %v1035 = vunpack.c.h.b16 %v1029
      %v1036 = vpack.c.b16 %v1032, %v1032
      %v1037 = vpack.c.b16 %v1033, %v1033
      %v1038 = vpack.c.b16 %v1034, %v1034
      %v1039 = vpack.c.b16 %v1035, %v1035
      %1044 = vst.msk [vmem:[#allocation3] sm:$0xf] %vm552, %v1036
      %1045 = vst.msk [vmem:[#allocation3 + $0x4] sm:$0xf] %vm552, %v1037
      %1046 = vst.msk [vmem:[#allocation3 + $0x8] sm:$0xf] %vm552, %v1038
      %vm1047 = vcmask 254976
      %1048 = vst.msk [vmem:[#allocation3 + $0xc] sm:$0x3] %vm1047, %v1039
      %v1049 = vld [vmem:[#allocation3] sm:$0xf]
      %v1050 = vld [vmem:[#allocation3 + $0x4] sm:$0xf]
      %v1051 = vld [vmem:[#allocation3 + $0x8] sm:$0xf]
      %s1052 = scalar_lea.vmem %s2, 80
      %v1053 = vld [vmem:[%s1052] sm:$0xf]
      %v1054 = vld [vmem:[%s1052 + $0x4] sm:$0xf]
      %v1055 = vld [vmem:[%s1052 + $0x8] sm:$0xf]
      %v1056 = vld [vmem:[%s1052 + $0xc] sm:$0xf]
      %v1057 = vld [vmem:[#allocation3 + $0xc] sm:$0x1]
      %s1058 = scalar_lea.vmem %s2, 96
      %v1059 = vld [vmem:[%s1058] sm:$0xf]
      %v1060 = vld [vmem:[%s1058 + $0x4] sm:$0xf]
      %v1061 = vld [vmem:[%s1058 + $0x8] sm:$0xf]
      %v1062 = vld [vmem:[%s1058 + $0xc] sm:$0xf]
      %v1067 = vunpack.c.l.b16 %v1049
      %v1068 = vunpack.c.l.b16 %v1050
      %v1069 = vunpack.c.l.b16 %v1051
      %v1070 = vunpack.c.l.b16 %v1057
      %v1071 = vpack.c.b16 %v1068, %v1067
      %v1072 = vpack.c.b16 %v1070, %v1069
      %v1074 = vshrl.u32 %v1071, 16
      %v1076 = vshll.u32 %v1071, 16
      %v1078 = vrot.slane %v1076, 1
      %v1079 = vor.u32 %v1074, %v1078
      %v1081 = vshll.u32 %v1072, 16
      %v1083 = vrot.slane %v1081, 1
      %v1084 = vsel %vm335, %v1079, %v1083
      %v1085 = vshrl.u32 %v1072, 16
      %v1087 = vor.u32 %v1085, %v1083
      %v1092 = vunpack.c.l.b16 %v1059
      %v1093 = vunpack.c.l.b16 %v1060
      %v1094 = vunpack.c.l.b16 %v1061
      %v1095 = vunpack.c.l.b16 %v1062
      %v1096 = vpack.c.b16 %v1093, %v1092
      %v1097 = vpack.c.b16 %v1095, %v1094
      %v1101 = vsel %vm413, %v1084, 0
      %v1104 = vsel %vm413, %v1087, 0
      %1106 = vmatprep.subr.bf16.mxu0 0
      %1107 = vmatpush1.bf16.msra.mxu0 0
      %1108 = vmatprep.subr.bf16.mxu0 0
      %1109 = vmatpush1.bf16.msra.mxu0 0
      %1110 = vmatprep.subr.bf16.mxu0 0
      %1111 = vmatpush1.bf16.msra.mxu0 0
      %1112 = vmatprep.subr.bf16.mxu0 0
      %1113 = vmatpush1.bf16.msra.mxu0 0
      %1114 = vmatprep.subr.bf16.mxu0 0
      %1115 = vmatpush1.bf16.msra.mxu0 0
      %1116 = vmatprep.subr.bf16.mxu0 0
      %1117 = vmatpush1.bf16.msra.mxu0 0
      %1118 = vmatprep.subr.bf16.mxu0 0
      %1119 = vmatpush1.bf16.msra.mxu0 %v1097
      %1120 = vmatprep.subr.bf16.mxu0 0
      %1121 = vmatpush1.bf16.msra.mxu0 %v1096
      %1122 = vmatprep.subr.bf16.mxu0 0
      %1123 = vmatpush2.bf16.msra.mxu0 0
      %1124 = vmatprep.subr.bf16.mxu0 0
      %1125 = vmatpush2.bf16.msra.mxu0 0
      %1126 = vmatprep.subr.bf16.mxu0 0
      %1127 = vmatpush2.bf16.msra.mxu0 0
      %1128 = vmatprep.subr.bf16.mxu0 0
      %1129 = vmatpush2.bf16.msra.mxu0 0
      %1130 = vmatprep.subr.bf16.mxu0 0
      %1131 = vmatpush2.bf16.msra.mxu0 0
      %1132 = vmatprep.subr.bf16.mxu0 0
      %1133 = vmatpush2.bf16.msra.mxu0 0
      %1134 = vmatprep.subr.bf16.mxu0 0
      %1135 = vmatpush2.bf16.msra.mxu0 0
      %1136 = vmatprep.subr.bf16.mxu0 0
      %1137 = vmatpush2.bf16.msra.mxu0 0
      %1138 = vmatprep.mubr.bf16.mxu0 0
      %1139 = vmatmul.mubr.bf16.gmra.mxu0 %v1101
      %v1140 = vpop.f32.mrf.mxu0
      %v1141 = vadd.f32 0.0, %v1140
      %v1142 = vpop.f32.mrf.mxu0
      %v1143 = vpop.f32.mrf.mxu0
      %v1144 = vadd.f32 0.0, %v1143
      %v1145 = vpop.f32.mrf.mxu0
      %1146 = vmatprep.mubr.bf16.mxu0 0
      %1147 = vmatmul.mubr.bf16.gmra.mxu0 %v1104
      %v1148 = vpop.f32.mrf.mxu0
      %v1149 = vadd.f32 0.0, %v1148
      %v1150 = vpop.f32.mrf.mxu0
      %v1151 = vpop.f32.mrf.mxu0
      %v1152 = vpop.f32.mrf.mxu0
      %1153 = vdwg.mxu0
      %v1154 = vpack.c.b16 %v1069, %v1069
      %v1159 = vunpack.c.l.b16 %v1053
      %v1160 = vunpack.c.l.b16 %v1054
      %v1161 = vunpack.c.l.b16 %v1055
      %v1162 = vunpack.c.l.b16 %v1056
      %v1163 = vpack.c.b16 %v1160, %v1159
      %v1164 = vpack.c.b16 %v1162, %v1161
      %v1167 = vsel %vm413, %v1071, 0
      %v1170 = vsel %vm413, %v1154, 0
      %1172 = vmatprep.subr.bf16.mxu0 0
      %1173 = vmatpush1.bf16.msra.mxu0 0
      %1174 = vmatprep.subr.bf16.mxu0 0
      %1175 = vmatpush1.bf16.msra.mxu0 0
      %1176 = vmatprep.subr.bf16.mxu0 0
      %1177 = vmatpush1.bf16.msra.mxu0 0
      %1178 = vmatprep.subr.bf16.mxu0 0
      %1179 = vmatpush1.bf16.msra.mxu0 0
      %1180 = vmatprep.subr.bf16.mxu0 0
      %1181 = vmatpush1.bf16.msra.mxu0 0
      %1182 = vmatprep.subr.bf16.mxu0 0
      %1183 = vmatpush1.bf16.msra.mxu0 0
      %1184 = vmatprep.subr.bf16.mxu0 0
      %1185 = vmatpush1.bf16.msra.mxu0 %v1164
      %1186 = vmatprep.subr.bf16.mxu0 0
      %1187 = vmatpush1.bf16.msra.mxu0 %v1163
      %1188 = vmatprep.subr.bf16.mxu0 0
      %1189 = vmatpush2.bf16.msra.mxu0 0
      %1190 = vmatprep.subr.bf16.mxu0 0
      %1191 = vmatpush2.bf16.msra.mxu0 0
      %1192 = vmatprep.subr.bf16.mxu0 0
      %1193 = vmatpush2.bf16.msra.mxu0 0
      %1194 = vmatprep.subr.bf16.mxu0 0
      %1195 = vmatpush2.bf16.msra.mxu0 0
      %1196 = vmatprep.subr.bf16.mxu0 0
      %1197 = vmatpush2.bf16.msra.mxu0 0
      %1198 = vmatprep.subr.bf16.mxu0 0
      %1199 = vmatpush2.bf16.msra.mxu0 0
      %1200 = vmatprep.subr.bf16.mxu0 0
      %1201 = vmatpush2.bf16.msra.mxu0 0
      %1202 = vmatprep.subr.bf16.mxu0 0
      %1203 = vmatpush2.bf16.msra.mxu0 0
      %1204 = vmatprep.mubr.bf16.mxu0 0
      %1205 = vmatmul.mubr.bf16.gmra.mxu0 %v1167
      %v1206 = vpop.f32.mrf.mxu0
      %v1207 = vadd.f32 %v1141, %v1206
      %v1208 = vpop.f32.mrf.mxu0
      %v1209 = vpop.f32.mrf.mxu0
      %v1210 = vadd.f32 %v1144, %v1209
      %v1211 = vpop.f32.mrf.mxu0
      %1212 = vmatprep.mubr.bf16.mxu0 0
      %1213 = vmatmul.mubr.bf16.gmra.mxu0 %v1170
      %v1214 = vpop.f32.mrf.mxu0
      %v1215 = vadd.f32 %v1149, %v1214
      %v1216 = vpop.f32.mrf.mxu0
      %v1217 = vpop.f32.mrf.mxu0
      %v1218 = vpop.f32.mrf.mxu0
      %1219 = vdwg.mxu0
      %v1220 = vld [vmem:[#allocation3] sm:$0xe]
      %s1221 = scalar_lea.vmem %s2, 112
      %v1222 = vld [vmem:[%s1221] sm:$0xf]
      %v1223 = vld [vmem:[%s1221 + $0x4] sm:$0xf]
      %v1224 = vld [vmem:[%s1221 + $0x8] sm:$0xf]
      %v1225 = vld [vmem:[%s1221 + $0xc] sm:$0xf]
      %v1227 = vunpack.c.l.b16 %v1220
      %v1228 = vpack.c.b16 %v1068, %v1227
      %v1229 = vrot.slane %v1228, 1
      %v1230 = vrot.slane %v1072, 1
      %v1231 = vsel %vm360, %v1229, %v1230
      %v1236 = vunpack.c.l.b16 %v1222
      %v1237 = vunpack.c.l.b16 %v1223
      %v1238 = vunpack.c.l.b16 %v1224
      %v1239 = vunpack.c.l.b16 %v1225
      %v1240 = vpack.c.b16 %v1237, %v1236
      %v1241 = vpack.c.b16 %v1239, %v1238
      %v1245 = vsel %vm413, %v1231, 0
      %v1248 = vsel %vm413, %v1230, 0
      %1250 = vmatprep.subr.bf16.mxu0 0
      %1251 = vmatpush1.bf16.msra.mxu0 0
      %1252 = vmatprep.subr.bf16.mxu0 0
      %1253 = vmatpush1.bf16.msra.mxu0 0
      %1254 = vmatprep.subr.bf16.mxu0 0
      %1255 = vmatpush1.bf16.msra.mxu0 0
      %1256 = vmatprep.subr.bf16.mxu0 0
      %1257 = vmatpush1.bf16.msra.mxu0 0
      %1258 = vmatprep.subr.bf16.mxu0 0
      %1259 = vmatpush1.bf16.msra.mxu0 0
      %1260 = vmatprep.subr.bf16.mxu0 0
      %1261 = vmatpush1.bf16.msra.mxu0 0
      %1262 = vmatprep.subr.bf16.mxu0 0
      %1263 = vmatpush1.bf16.msra.mxu0 %v1241
      %1264 = vmatprep.subr.bf16.mxu0 0
      %1265 = vmatpush1.bf16.msra.mxu0 %v1240
      %1266 = vmatprep.subr.bf16.mxu0 0
      %1267 = vmatpush2.bf16.msra.mxu0 0
      %1268 = vmatprep.subr.bf16.mxu0 0
      %1269 = vmatpush2.bf16.msra.mxu0 0
      %1270 = vmatprep.subr.bf16.mxu0 0
      %1271 = vmatpush2.bf16.msra.mxu0 0
      %1272 = vmatprep.subr.bf16.mxu0 0
      %1273 = vmatpush2.bf16.msra.mxu0 0
      %1274 = vmatprep.subr.bf16.mxu0 0
      %1275 = vmatpush2.bf16.msra.mxu0 0
      %1276 = vmatprep.subr.bf16.mxu0 0
      %1277 = vmatpush2.bf16.msra.mxu0 0
      %1278 = vmatprep.subr.bf16.mxu0 0
      %1279 = vmatpush2.bf16.msra.mxu0 0
      %1280 = vmatprep.subr.bf16.mxu0 0
      %1281 = vmatpush2.bf16.msra.mxu0 0
      %1282 = vmatprep.mubr.bf16.mxu0 0
      %1283 = vmatmul.mubr.bf16.gmra.mxu0 %v1245
      %v1284 = vpop.f32.mrf.mxu0
      %v1285 = vadd.f32 0.0, %v1284
      %v1286 = vpop.f32.mrf.mxu0
      %v1287 = vpop.f32.mrf.mxu0
      %v1288 = vadd.f32 0.0, %v1287
      %v1289 = vpop.f32.mrf.mxu0
      %1290 = vmatprep.mubr.bf16.mxu0 0
      %1291 = vmatmul.mubr.bf16.gmra.mxu0 %v1248
      %v1292 = vpop.f32.mrf.mxu0
      %v1293 = vadd.f32 0.0, %v1292
      %v1294 = vpop.f32.mrf.mxu0
      %v1295 = vpop.f32.mrf.mxu0
      %v1296 = vpop.f32.mrf.mxu0
      %1297 = vdwg.mxu0
      %v1298 = vadd.f32 %v1207, %v1285
      %v1299 = vadd.f32 %v1210, %v1288
      %v1300 = vadd.f32 %v1215, %v1293
      %v1301 = vld [vmem:[#allocation3 + $0xc] sm:$0x3]
      %s1302 = scalar_lea.vmem %s2, 128
      %v1303 = vld [vmem:[%s1302] sm:$0xf]
      %v1304 = vld [vmem:[%s1302 + $0x4] sm:$0xf]
      %v1305 = vld [vmem:[%s1302 + $0x8] sm:$0xf]
      %v1306 = vld [vmem:[%s1302 + $0xc] sm:$0xf]
      %v1308 = vunpack.c.l.b16 %v1301
      %v1309 = vpack.c.b16 %v1308, %v1069
      %v1311 = vshrl.u32 %v1228, 16
      %v1313 = vrot.slane %v1311, 1
      %v1314 = vshll.u32 %v1228, 16
      %v1316 = vrot.slane %v1314, 2
      %v1317 = vor.u32 %v1313, %v1316
      %v1319 = vshrl.u32 %v1309, 16
      %v1321 = vrot.slane %v1319, 1
      %v1322 = vshll.u32 %v1309, 16
      %v1324 = vrot.slane %v1322, 2
      %v1325 = vor.u32 %v1321, %v1324
      %v1326 = vsel %vm370, %v1317, %v1325
      %v1331 = vunpack.c.l.b16 %v1303
      %v1332 = vunpack.c.l.b16 %v1304
      %v1333 = vunpack.c.l.b16 %v1305
      %v1334 = vunpack.c.l.b16 %v1306
      %v1335 = vpack.c.b16 %v1332, %v1331
      %v1336 = vpack.c.b16 %v1334, %v1333
      %v1340 = vsel %vm413, %v1326, 0
      %v1343 = vsel %vm413, %v1325, 0
      %1345 = vmatprep.subr.bf16.mxu0 0
      %1346 = vmatpush1.bf16.msra.mxu0 0
      %1347 = vmatprep.subr.bf16.mxu0 0
      %1348 = vmatpush1.bf16.msra.mxu0 0
      %1349 = vmatprep.subr.bf16.mxu0 0
      %1350 = vmatpush1.bf16.msra.mxu0 0
      %1351 = vmatprep.subr.bf16.mxu0 0
      %1352 = vmatpush1.bf16.msra.mxu0 0
      %1353 = vmatprep.subr.bf16.mxu0 0
      %1354 = vmatpush1.bf16.msra.mxu0 0
      %1355 = vmatprep.subr.bf16.mxu0 0
      %1356 = vmatpush1.bf16.msra.mxu0 0
      %1357 = vmatprep.subr.bf16.mxu0 0
      %1358 = vmatpush1.bf16.msra.mxu0 %v1336
      %1359 = vmatprep.subr.bf16.mxu0 0
      %1360 = vmatpush1.bf16.msra.mxu0 %v1335
      %1361 = vmatprep.subr.bf16.mxu0 0
      %1362 = vmatpush2.bf16.msra.mxu0 0
      %1363 = vmatprep.subr.bf16.mxu0 0
      %1364 = vmatpush2.bf16.msra.mxu0 0
      %1365 = vmatprep.subr.bf16.mxu0 0
      %1366 = vmatpush2.bf16.msra.mxu0 0
      %1367 = vmatprep.subr.bf16.mxu0 0
      %1368 = vmatpush2.bf16.msra.mxu0 0
      %1369 = vmatprep.subr.bf16.mxu0 0
      %1370 = vmatpush2.bf16.msra.mxu0 0
      %1371 = vmatprep.subr.bf16.mxu0 0
      %1372 = vmatpush2.bf16.msra.mxu0 0
      %1373 = vmatprep.subr.bf16.mxu0 0
      %1374 = vmatpush2.bf16.msra.mxu0 0
      %1375 = vmatprep.subr.bf16.mxu0 0
      %1376 = vmatpush2.bf16.msra.mxu0 0
      %1377 = vmatprep.mubr.bf16.mxu0 0
      %1378 = vmatmul.mubr.bf16.gmra.mxu0 %v1340
      %v1379 = vpop.f32.mrf.mxu0
      %v1380 = vadd.f32 0.0, %v1379
      %v1381 = vpop.f32.mrf.mxu0
      %v1382 = vpop.f32.mrf.mxu0
      %v1383 = vadd.f32 0.0, %v1382
      %v1384 = vpop.f32.mrf.mxu0
      %1385 = vmatprep.mubr.bf16.mxu0 0
      %1386 = vmatmul.mubr.bf16.gmra.mxu0 %v1343
      %v1387 = vpop.f32.mrf.mxu0
      %v1388 = vadd.f32 0.0, %v1387
      %v1389 = vpop.f32.mrf.mxu0
      %v1390 = vpop.f32.mrf.mxu0
      %v1391 = vpop.f32.mrf.mxu0
      %1392 = vdwg.mxu0
      %v1393 = vadd.f32 %v1298, %v1380
      %v1394 = vadd.f32 %v1299, %v1383
      %v1395 = vadd.f32 %v1300, %v1388
      %v1396 = vld [vmem:[#allocation3] sm:$0xc]
      %s1397 = scalar_lea.vmem %s2, 144
      %v1398 = vld [vmem:[%s1397] sm:$0xf]
      %v1399 = vld [vmem:[%s1397 + $0x4] sm:$0xf]
      %v1400 = vld [vmem:[%s1397 + $0x8] sm:$0xf]
      %v1401 = vld [vmem:[%s1397 + $0xc] sm:$0xf]
      %v1403 = vunpack.c.l.b16 %v1396
      %v1404 = vpack.c.b16 %v1068, %v1403
      %v1405 = vrot.slane %v1404, 2
      %v1406 = vrot.slane %v1309, 2
      %v1407 = vsel %vm388, %v1405, %v1406
      %v1412 = vunpack.c.l.b16 %v1398
      %v1413 = vunpack.c.l.b16 %v1399
      %v1414 = vunpack.c.l.b16 %v1400
      %v1415 = vunpack.c.l.b16 %v1401
      %v1416 = vpack.c.b16 %v1413, %v1412
      %v1417 = vpack.c.b16 %v1415, %v1414
      %v1421 = vsel %vm413, %v1407, 0
      %v1424 = vsel %vm413, %v1406, 0
      %1426 = vmatprep.subr.bf16.mxu0 0
      %1427 = vmatpush1.bf16.msra.mxu0 0
      %1428 = vmatprep.subr.bf16.mxu0 0
      %1429 = vmatpush1.bf16.msra.mxu0 0
      %1430 = vmatprep.subr.bf16.mxu0 0
      %1431 = vmatpush1.bf16.msra.mxu0 0
      %1432 = vmatprep.subr.bf16.mxu0 0
      %1433 = vmatpush1.bf16.msra.mxu0 0
      %1434 = vmatprep.subr.bf16.mxu0 0
      %1435 = vmatpush1.bf16.msra.mxu0 0
      %1436 = vmatprep.subr.bf16.mxu0 0
      %1437 = vmatpush1.bf16.msra.mxu0 0
      %1438 = vmatprep.subr.bf16.mxu0 0
      %1439 = vmatpush1.bf16.msra.mxu0 %v1417
      %1440 = vmatprep.subr.bf16.mxu0 0
      %1441 = vmatpush1.bf16.msra.mxu0 %v1416
      %1442 = vmatprep.subr.bf16.mxu0 0
      %1443 = vmatpush2.bf16.msra.mxu0 0
      %1444 = vmatprep.subr.bf16.mxu0 0
      %1445 = vmatpush2.bf16.msra.mxu0 0
      %1446 = vmatprep.subr.bf16.mxu0 0
      %1447 = vmatpush2.bf16.msra.mxu0 0
      %1448 = vmatprep.subr.bf16.mxu0 0
      %1449 = vmatpush2.bf16.msra.mxu0 0
      %1450 = vmatprep.subr.bf16.mxu0 0
      %1451 = vmatpush2.bf16.msra.mxu0 0
      %1452 = vmatprep.subr.bf16.mxu0 0
      %1453 = vmatpush2.bf16.msra.mxu0 0
      %1454 = vmatprep.subr.bf16.mxu0 0
      %1455 = vmatpush2.bf16.msra.mxu0 0
      %1456 = vmatprep.subr.bf16.mxu0 0
      %1457 = vmatpush2.bf16.msra.mxu0 0
      %1458 = vmatprep.mubr.bf16.mxu0 0
      %1459 = vmatmul.mubr.bf16.gmra.mxu0 %v1421
      %v1460 = vpop.f32.mrf.mxu0
      %v1461 = vadd.f32 0.0, %v1460
      %v1462 = vpop.f32.mrf.mxu0
      %v1463 = vpop.f32.mrf.mxu0
      %v1464 = vadd.f32 0.0, %v1463
      %v1465 = vpop.f32.mrf.mxu0
      %1466 = vmatprep.mubr.bf16.mxu0 0
      %1467 = vmatmul.mubr.bf16.gmra.mxu0 %v1424
      %v1468 = vpop.f32.mrf.mxu0
      %v1469 = vadd.f32 0.0, %v1468
      %v1470 = vpop.f32.mrf.mxu0
      %v1471 = vpop.f32.mrf.mxu0
      %v1472 = vpop.f32.mrf.mxu0
      %1473 = vdwg.mxu0
      %v1474 = vadd.f32 %v1393, %v1461
      %v1475 = vadd.f32 %v1394, %v1464
      %v1476 = vadd.f32 %v1395, %v1469
      %v1477 = vld [vmem:[%s5 + $0x1] sm:$0x1]
      %v1478 = vlaneseq
      %v1479 = vshrl.u32 %v1478, 7
      %v1480 = vsub.s32 0, %v1479
      %v1481 = vrot.slane %v1477, %v1480
      %v1482 = vadd.f32 %v1474, %v1481
      %v1483 = vadd.f32 %v1475, %v1481
      %v1484 = vadd.f32 %v1476, %v1481
      %v1485 = vtanh.pop %v1482
      %v1486 = vtanh.pop %v1483
      %v1487 = vtanh.pop %v1484
      %vm1488 = vcmp.ge.s32.totalorder %v508, 8
      %vm1489 = vcmp.ge.s32.totalorder %v509, 8
      %vm1490 = vcmp.ge.s32.totalorder %v510, 8
      %vm1491 = vmor %vm519, %vm1488
      %vm1492 = vmor %vm519, %vm1489
      %vm1493 = vmor %vm519, %vm1490
      %v1494 = vsel %vm1491, 1, 0
      %v1495 = vsel %vm1492, 1, 0
      %v1496 = vsel %vm1493, 1, 0
      %vm1497 = vcmp.eq.s32.totalorder %v1494, 1
      %vm1498 = vcmp.eq.s32.totalorder %v1495, 1
      %vm1499 = vcmp.eq.s32.totalorder %v1496, 1
      %v1500 = vsel %vm1497, %v1485, 0.0
      %v1501 = vsel %vm1498, %v1486, 0.0
      %v1502 = vsel %vm1499, %v1487, 0.0
      %v1503 = vpack.c.bf16 %v1501, %v1500
      %v1504 = vpack.c.bf16 %v1502, %v1502
      %v1507 = vunpack.c.l.b16 %v1503
      %v1508 = vunpack.c.h.b16 %v1503
      %v1509 = vunpack.c.l.b16 %v1504
      %v1510 = vpack.c.b16 %v1507, %v1507
      %v1511 = vpack.c.b16 %v1508, %v1508
      %v1512 = vpack.c.b16 %v1509, %v1509
      %1516 = vst.msk [vmem:[#allocation2] sm:$0xf] %vm552, %v1510
      %1517 = vst.msk [vmem:[#allocation2 + $0x4] sm:$0xf] %vm552, %v1511
      %1518 = vst.msk [vmem:[#allocation2 + $0x8] sm:$0xf] %vm552, %v1512
      %v1519 = vld [vmem:[#allocation2] sm:$0xf]
      %v1520 = vld [vmem:[#allocation2 + $0x4] sm:$0xf]
      %v1521 = vld [vmem:[#allocation2 + $0x8] sm:$0x3]
      %s1522 = scalar_lea.vmem %s2, 160
      %v1523 = vld [vmem:[%s1522] sm:$0xf]
      %v1524 = vld [vmem:[%s1522 + $0x4] sm:$0xf]
      %v1525 = vld [vmem:[%s1522 + $0x8] sm:$0xf]
      %v1526 = vld [vmem:[%s1522 + $0xc] sm:$0xf]
      %v1527 = vld [vmem:[#allocation2 + $0x8] sm:$0x7]
      %s1528 = scalar_lea.vmem %s2, 176
      %v1529 = vld [vmem:[%s1528] sm:$0xf]
      %v1530 = vld [vmem:[%s1528 + $0x4] sm:$0xf]
      %v1531 = vld [vmem:[%s1528 + $0x8] sm:$0xf]
      %v1532 = vld [vmem:[%s1528 + $0xc] sm:$0xf]
      %v1536 = vunpack.c.l.b16 %v1519
      %v1537 = vunpack.c.l.b16 %v1520
      %v1538 = vunpack.c.l.b16 %v1527
      %v1539 = vpack.c.b16 %v1537, %v1536
      %v1540 = vpack.c.b16 %v1538, %v1538
      %v1542 = vshrl.u32 %v1539, 16
      %v1544 = vshll.u32 %v1539, 16
      %v1546 = vrot.slane %v1544, 1
      %v1547 = vor.u32 %v1542, %v1546
      %v1549 = vshll.u32 %v1540, 16
      %v1551 = vrot.slane %v1549, 1
      %v1552 = vsel %vm335, %v1547, %v1551
      %v1553 = vshrl.u32 %v1540, 16
      %v1555 = vor.u32 %v1553, %v1551
      %v1560 = vunpack.c.l.b16 %v1529
      %v1561 = vunpack.c.l.b16 %v1530
      %v1562 = vunpack.c.l.b16 %v1531
      %v1563 = vunpack.c.l.b16 %v1532
      %v1564 = vpack.c.b16 %v1561, %v1560
      %v1565 = vpack.c.b16 %v1563, %v1562
      %v1569 = vsel %vm413, %v1552, 0
      %v1572 = vsel %vm413, %v1555, 0
      %1574 = vmatprep.subr.bf16.mxu0 0
      %1575 = vmatpush1.bf16.msra.mxu0 0
      %1576 = vmatprep.subr.bf16.mxu0 0
      %1577 = vmatpush1.bf16.msra.mxu0 0
      %1578 = vmatprep.subr.bf16.mxu0 0
      %1579 = vmatpush1.bf16.msra.mxu0 0
      %1580 = vmatprep.subr.bf16.mxu0 0
      %1581 = vmatpush1.bf16.msra.mxu0 0
      %1582 = vmatprep.subr.bf16.mxu0 0
      %1583 = vmatpush1.bf16.msra.mxu0 0
      %1584 = vmatprep.subr.bf16.mxu0 0
      %1585 = vmatpush1.bf16.msra.mxu0 0
      %1586 = vmatprep.subr.bf16.mxu0 0
      %1587 = vmatpush1.bf16.msra.mxu0 %v1565
      %1588 = vmatprep.subr.bf16.mxu0 0
      %1589 = vmatpush1.bf16.msra.mxu0 %v1564
      %1590 = vmatprep.subr.bf16.mxu0 0
      %1591 = vmatpush2.bf16.msra.mxu0 0
      %1592 = vmatprep.subr.bf16.mxu0 0
      %1593 = vmatpush2.bf16.msra.mxu0 0
      %1594 = vmatprep.subr.bf16.mxu0 0
      %1595 = vmatpush2.bf16.msra.mxu0 0
      %1596 = vmatprep.subr.bf16.mxu0 0
      %1597 = vmatpush2.bf16.msra.mxu0 0
      %1598 = vmatprep.subr.bf16.mxu0 0
      %1599 = vmatpush2.bf16.msra.mxu0 0
      %1600 = vmatprep.subr.bf16.mxu0 0
      %1601 = vmatpush2.bf16.msra.mxu0 0
      %1602 = vmatprep.subr.bf16.mxu0 0
      %1603 = vmatpush2.bf16.msra.mxu0 0
      %1604 = vmatprep.subr.bf16.mxu0 0
      %1605 = vmatpush2.bf16.msra.mxu0 0
      %1606 = vmatprep.mubr.bf16.mxu0 0
      %1607 = vmatmul.mubr.bf16.gmra.mxu0 %v1569
      %v1608 = vpop.f32.mrf.mxu0
      %v1609 = vadd.f32 0.0, %v1608
      %v1610 = vpop.f32.mrf.mxu0
      %v1611 = vpop.f32.mrf.mxu0
      %v1612 = vadd.f32 0.0, %v1611
      %v1613 = vpop.f32.mrf.mxu0
      %1614 = vmatprep.mubr.bf16.mxu0 0
      %1615 = vmatmul.mubr.bf16.gmra.mxu0 %v1572
      %v1616 = vpop.f32.mrf.mxu0
      %v1617 = vadd.f32 0.0, %v1616
      %v1618 = vpop.f32.mrf.mxu0
      %v1619 = vpop.f32.mrf.mxu0
      %v1620 = vpop.f32.mrf.mxu0
      %1621 = vdwg.mxu0
      %v1623 = vunpack.c.l.b16 %v1521
      %v1624 = vpack.c.b16 %v1623, %v1623
      %v1629 = vunpack.c.l.b16 %v1523
      %v1630 = vunpack.c.l.b16 %v1524
      %v1631 = vunpack.c.l.b16 %v1525
      %v1632 = vunpack.c.l.b16 %v1526
      %v1633 = vpack.c.b16 %v1630, %v1629
      %v1634 = vpack.c.b16 %v1632, %v1631
      %v1637 = vsel %vm413, %v1539, 0
      %v1640 = vsel %vm413, %v1624, 0
      %1642 = vmatprep.subr.bf16.mxu0 0
      %1643 = vmatpush1.bf16.msra.mxu0 0
      %1644 = vmatprep.subr.bf16.mxu0 0
      %1645 = vmatpush1.bf16.msra.mxu0 0
      %1646 = vmatprep.subr.bf16.mxu0 0
      %1647 = vmatpush1.bf16.msra.mxu0 0
      %1648 = vmatprep.subr.bf16.mxu0 0
      %1649 = vmatpush1.bf16.msra.mxu0 0
      %1650 = vmatprep.subr.bf16.mxu0 0
      %1651 = vmatpush1.bf16.msra.mxu0 0
      %1652 = vmatprep.subr.bf16.mxu0 0
      %1653 = vmatpush1.bf16.msra.mxu0 0
      %1654 = vmatprep.subr.bf16.mxu0 0
      %1655 = vmatpush1.bf16.msra.mxu0 %v1634
      %1656 = vmatprep.subr.bf16.mxu0 0
      %1657 = vmatpush1.bf16.msra.mxu0 %v1633
      %1658 = vmatprep.subr.bf16.mxu0 0
      %1659 = vmatpush2.bf16.msra.mxu0 0
      %1660 = vmatprep.subr.bf16.mxu0 0
      %1661 = vmatpush2.bf16.msra.mxu0 0
      %1662 = vmatprep.subr.bf16.mxu0 0
      %1663 = vmatpush2.bf16.msra.mxu0 0
      %1664 = vmatprep.subr.bf16.mxu0 0
      %1665 = vmatpush2.bf16.msra.mxu0 0
      %1666 = vmatprep.subr.bf16.mxu0 0
      %1667 = vmatpush2.bf16.msra.mxu0 0
      %1668 = vmatprep.subr.bf16.mxu0 0
      %1669 = vmatpush2.bf16.msra.mxu0 0
      %1670 = vmatprep.subr.bf16.mxu0 0
      %1671 = vmatpush2.bf16.msra.mxu0 0
      %1672 = vmatprep.subr.bf16.mxu0 0
      %1673 = vmatpush2.bf16.msra.mxu0 0
      %1674 = vmatprep.mubr.bf16.mxu0 0
      %1675 = vmatmul.mubr.bf16.gmra.mxu0 %v1637
      %v1676 = vpop.f32.mrf.mxu0
      %v1677 = vadd.f32 %v1609, %v1676
      %v1678 = vpop.f32.mrf.mxu0
      %v1679 = vpop.f32.mrf.mxu0
      %v1680 = vadd.f32 %v1612, %v1679
      %v1681 = vpop.f32.mrf.mxu0
      %1682 = vmatprep.mubr.bf16.mxu0 0
      %1683 = vmatmul.mubr.bf16.gmra.mxu0 %v1640
      %v1684 = vpop.f32.mrf.mxu0
      %v1685 = vadd.f32 %v1617, %v1684
      %v1686 = vpop.f32.mrf.mxu0
      %v1687 = vpop.f32.mrf.mxu0
      %v1688 = vpop.f32.mrf.mxu0
      %1689 = vdwg.mxu0
      %v1690 = vld [vmem:[#allocation2] sm:$0xe]
      %s1691 = scalar_lea.vmem %s2, 192
      %v1692 = vld [vmem:[%s1691] sm:$0xf]
      %v1693 = vld [vmem:[%s1691 + $0x4] sm:$0xf]
      %v1694 = vld [vmem:[%s1691 + $0x8] sm:$0xf]
      %v1695 = vld [vmem:[%s1691 + $0xc] sm:$0xf]
      %v1697 = vunpack.c.l.b16 %v1690
      %v1698 = vpack.c.b16 %v1537, %v1697
      %v1699 = vrot.slane %v1698, 1
      %v1700 = vrot.slane %v1540, 1
      %v1701 = vsel %vm360, %v1699, %v1700
      %v1706 = vunpack.c.l.b16 %v1692
      %v1707 = vunpack.c.l.b16 %v1693
      %v1708 = vunpack.c.l.b16 %v1694
      %v1709 = vunpack.c.l.b16 %v1695
      %v1710 = vpack.c.b16 %v1707, %v1706
      %v1711 = vpack.c.b16 %v1709, %v1708
      %v1715 = vsel %vm413, %v1701, 0
      %v1718 = vsel %vm413, %v1700, 0
      %1720 = vmatprep.subr.bf16.mxu0 0
      %1721 = vmatpush1.bf16.msra.mxu0 0
      %1722 = vmatprep.subr.bf16.mxu0 0
      %1723 = vmatpush1.bf16.msra.mxu0 0
      %1724 = vmatprep.subr.bf16.mxu0 0
      %1725 = vmatpush1.bf16.msra.mxu0 0
      %1726 = vmatprep.subr.bf16.mxu0 0
      %1727 = vmatpush1.bf16.msra.mxu0 0
      %1728 = vmatprep.subr.bf16.mxu0 0
      %1729 = vmatpush1.bf16.msra.mxu0 0
      %1730 = vmatprep.subr.bf16.mxu0 0
      %1731 = vmatpush1.bf16.msra.mxu0 0
      %1732 = vmatprep.subr.bf16.mxu0 0
      %1733 = vmatpush1.bf16.msra.mxu0 %v1711
      %1734 = vmatprep.subr.bf16.mxu0 0
      %1735 = vmatpush1.bf16.msra.mxu0 %v1710
      %1736 = vmatprep.subr.bf16.mxu0 0
      %1737 = vmatpush2.bf16.msra.mxu0 0
      %1738 = vmatprep.subr.bf16.mxu0 0
      %1739 = vmatpush2.bf16.msra.mxu0 0
      %1740 = vmatprep.subr.bf16.mxu0 0
      %1741 = vmatpush2.bf16.msra.mxu0 0
      %1742 = vmatprep.subr.bf16.mxu0 0
      %1743 = vmatpush2.bf16.msra.mxu0 0
      %1744 = vmatprep.subr.bf16.mxu0 0
      %1745 = vmatpush2.bf16.msra.mxu0 0
      %1746 = vmatprep.subr.bf16.mxu0 0
      %1747 = vmatpush2.bf16.msra.mxu0 0
      %1748 = vmatprep.subr.bf16.mxu0 0
      %1749 = vmatpush2.bf16.msra.mxu0 0
      %1750 = vmatprep.subr.bf16.mxu0 0
      %1751 = vmatpush2.bf16.msra.mxu0 0
      %1752 = vmatprep.mubr.bf16.mxu0 0
      %1753 = vmatmul.mubr.bf16.gmra.mxu0 %v1715
      %v1754 = vpop.f32.mrf.mxu0
      %v1755 = vadd.f32 0.0, %v1754
      %v1756 = vpop.f32.mrf.mxu0
      %v1757 = vpop.f32.mrf.mxu0
      %v1758 = vadd.f32 0.0, %v1757
      %v1759 = vpop.f32.mrf.mxu0
      %1760 = vmatprep.mubr.bf16.mxu0 0
      %1761 = vmatmul.mubr.bf16.gmra.mxu0 %v1718
      %v1762 = vpop.f32.mrf.mxu0
      %v1763 = vadd.f32 0.0, %v1762
      %v1764 = vpop.f32.mrf.mxu0
      %v1765 = vpop.f32.mrf.mxu0
      %v1766 = vpop.f32.mrf.mxu0
      %1767 = vdwg.mxu0
      %v1768 = vadd.f32 %v1677, %v1755
      %v1769 = vadd.f32 %v1680, %v1758
      %v1770 = vadd.f32 %v1685, %v1763
      %v1771 = vld [vmem:[#allocation2 + $0x8] sm:$0xf]
      %s1772 = scalar_lea.vmem %s2, 208
      %v1773 = vld [vmem:[%s1772] sm:$0xf]
      %v1774 = vld [vmem:[%s1772 + $0x4] sm:$0xf]
      %v1775 = vld [vmem:[%s1772 + $0x8] sm:$0xf]
      %v1776 = vld [vmem:[%s1772 + $0xc] sm:$0xf]
      %v1778 = vunpack.c.l.b16 %v1771
      %v1779 = vpack.c.b16 %v1778, %v1778
      %v1781 = vshrl.u32 %v1698, 16
      %v1783 = vrot.slane %v1781, 1
      %v1784 = vshll.u32 %v1698, 16
      %v1786 = vrot.slane %v1784, 2
      %v1787 = vor.u32 %v1783, %v1786
      %v1789 = vshrl.u32 %v1779, 16
      %v1791 = vrot.slane %v1789, 1
      %v1792 = vshll.u32 %v1779, 16
      %v1794 = vrot.slane %v1792, 2
      %v1795 = vor.u32 %v1791, %v1794
      %v1796 = vsel %vm370, %v1787, %v1795
      %v1801 = vunpack.c.l.b16 %v1773
      %v1802 = vunpack.c.l.b16 %v1774
      %v1803 = vunpack.c.l.b16 %v1775
      %v1804 = vunpack.c.l.b16 %v1776
      %v1805 = vpack.c.b16 %v1802, %v1801
      %v1806 = vpack.c.b16 %v1804, %v1803
      %v1810 = vsel %vm413, %v1796, 0
      %v1813 = vsel %vm413, %v1795, 0
      %1815 = vmatprep.subr.bf16.mxu0 0
      %1816 = vmatpush1.bf16.msra.mxu0 0
      %1817 = vmatprep.subr.bf16.mxu0 0
      %1818 = vmatpush1.bf16.msra.mxu0 0
      %1819 = vmatprep.subr.bf16.mxu0 0
      %1820 = vmatpush1.bf16.msra.mxu0 0
      %1821 = vmatprep.subr.bf16.mxu0 0
      %1822 = vmatpush1.bf16.msra.mxu0 0
      %1823 = vmatprep.subr.bf16.mxu0 0
      %1824 = vmatpush1.bf16.msra.mxu0 0
      %1825 = vmatprep.subr.bf16.mxu0 0
      %1826 = vmatpush1.bf16.msra.mxu0 0
      %1827 = vmatprep.subr.bf16.mxu0 0
      %1828 = vmatpush1.bf16.msra.mxu0 %v1806
      %1829 = vmatprep.subr.bf16.mxu0 0
      %1830 = vmatpush1.bf16.msra.mxu0 %v1805
      %1831 = vmatprep.subr.bf16.mxu0 0
      %1832 = vmatpush2.bf16.msra.mxu0 0
      %1833 = vmatprep.subr.bf16.mxu0 0
      %1834 = vmatpush2.bf16.msra.mxu0 0
      %1835 = vmatprep.subr.bf16.mxu0 0
      %1836 = vmatpush2.bf16.msra.mxu0 0
      %1837 = vmatprep.subr.bf16.mxu0 0
      %1838 = vmatpush2.bf16.msra.mxu0 0
      %1839 = vmatprep.subr.bf16.mxu0 0
      %1840 = vmatpush2.bf16.msra.mxu0 0
      %1841 = vmatprep.subr.bf16.mxu0 0
      %1842 = vmatpush2.bf16.msra.mxu0 0
      %1843 = vmatprep.subr.bf16.mxu0 0
      %1844 = vmatpush2.bf16.msra.mxu0 0
      %1845 = vmatprep.subr.bf16.mxu0 0
      %1846 = vmatpush2.bf16.msra.mxu0 0
      %1847 = vmatprep.mubr.bf16.mxu0 0
      %1848 = vmatmul.mubr.bf16.gmra.mxu0 %v1810
      %v1849 = vpop.f32.mrf.mxu0
      %v1850 = vadd.f32 0.0, %v1849
      %v1851 = vpop.f32.mrf.mxu0
      %v1852 = vpop.f32.mrf.mxu0
      %v1853 = vadd.f32 0.0, %v1852
      %v1854 = vpop.f32.mrf.mxu0
      %1855 = vmatprep.mubr.bf16.mxu0 0
      %1856 = vmatmul.mubr.bf16.gmra.mxu0 %v1813
      %v1857 = vpop.f32.mrf.mxu0
      %v1858 = vadd.f32 0.0, %v1857
      %v1859 = vpop.f32.mrf.mxu0
      %v1860 = vpop.f32.mrf.mxu0
      %v1861 = vpop.f32.mrf.mxu0
      %1862 = vdwg.mxu0
      %v1863 = vadd.f32 %v1768, %v1850
      %v1864 = vadd.f32 %v1769, %v1853
      %v1865 = vadd.f32 %v1770, %v1858
      %v1866 = vld [vmem:[#allocation2] sm:$0xc]
      %s1867 = scalar_lea.vmem %s2, 224
      %v1868 = vld [vmem:[%s1867] sm:$0xf]
      %v1869 = vld [vmem:[%s1867 + $0x4] sm:$0xf]
      %v1870 = vld [vmem:[%s1867 + $0x8] sm:$0xf]
      %v1871 = vld [vmem:[%s1867 + $0xc] sm:$0xf]
      %v1873 = vunpack.c.l.b16 %v1866
      %v1874 = vpack.c.b16 %v1537, %v1873
      %v1875 = vrot.slane %v1874, 2
      %v1876 = vrot.slane %v1779, 2
      %v1877 = vsel %vm388, %v1875, %v1876
      %v1882 = vunpack.c.l.b16 %v1868
      %v1883 = vunpack.c.l.b16 %v1869
      %v1884 = vunpack.c.l.b16 %v1870
      %v1885 = vunpack.c.l.b16 %v1871
      %v1886 = vpack.c.b16 %v1883, %v1882
      %v1887 = vpack.c.b16 %v1885, %v1884
      %v1891 = vsel %vm413, %v1877, 0
      %v1894 = vsel %vm413, %v1876, 0
      %1896 = vmatprep.subr.bf16.mxu0 0
      %1897 = vmatpush1.bf16.msra.mxu0 0
      %1898 = vmatprep.subr.bf16.mxu0 0
      %1899 = vmatpush1.bf16.msra.mxu0 0
      %1900 = vmatprep.subr.bf16.mxu0 0
      %1901 = vmatpush1.bf16.msra.mxu0 0
      %1902 = vmatprep.subr.bf16.mxu0 0
      %1903 = vmatpush1.bf16.msra.mxu0 0
      %1904 = vmatprep.subr.bf16.mxu0 0
      %1905 = vmatpush1.bf16.msra.mxu0 0
      %1906 = vmatprep.subr.bf16.mxu0 0
      %1907 = vmatpush1.bf16.msra.mxu0 0
      %1908 = vmatprep.subr.bf16.mxu0 0
      %1909 = vmatpush1.bf16.msra.mxu0 %v1887
      %1910 = vmatprep.subr.bf16.mxu0 0
      %1911 = vmatpush1.bf16.msra.mxu0 %v1886
      %1912 = vmatprep.subr.bf16.mxu0 0
      %1913 = vmatpush2.bf16.msra.mxu0 0
      %1914 = vmatprep.subr.bf16.mxu0 0
      %1915 = vmatpush2.bf16.msra.mxu0 0
      %1916 = vmatprep.subr.bf16.mxu0 0
      %1917 = vmatpush2.bf16.msra.mxu0 0
      %1918 = vmatprep.subr.bf16.mxu0 0
      %1919 = vmatpush2.bf16.msra.mxu0 0
      %1920 = vmatprep.subr.bf16.mxu0 0
      %1921 = vmatpush2.bf16.msra.mxu0 0
      %1922 = vmatprep.subr.bf16.mxu0 0
      %1923 = vmatpush2.bf16.msra.mxu0 0
      %1924 = vmatprep.subr.bf16.mxu0 0
      %1925 = vmatpush2.bf16.msra.mxu0 0
      %1926 = vmatprep.subr.bf16.mxu0 0
      %1927 = vmatpush2.bf16.msra.mxu0 0
      %1928 = vmatprep.mubr.bf16.mxu0 0
      %1929 = vmatmul.mubr.bf16.gmra.mxu0 %v1891
      %v1930 = vpop.f32.mrf.mxu0
      %v1931 = vadd.f32 0.0, %v1930
      %v1932 = vpop.f32.mrf.mxu0
      %v1933 = vpop.f32.mrf.mxu0
      %v1934 = vadd.f32 0.0, %v1933
      %v1935 = vpop.f32.mrf.mxu0
      %1936 = vmatprep.mubr.bf16.mxu0 0
      %1937 = vmatmul.mubr.bf16.gmra.mxu0 %v1894
      %v1938 = vpop.f32.mrf.mxu0
      %v1939 = vadd.f32 0.0, %v1938
      %v1940 = vpop.f32.mrf.mxu0
      %v1941 = vpop.f32.mrf.mxu0
      %v1942 = vpop.f32.mrf.mxu0
      %1943 = vdwg.mxu0
      %v1944 = vadd.f32 %v1863, %v1931
      %v1945 = vadd.f32 %v1864, %v1934
      %v1946 = vadd.f32 %v1865, %v1939
      %v1947 = vld [vmem:[%s5 + $0x2] sm:$0x1]
      %v1948 = vlaneseq
      %v1949 = vshrl.u32 %v1948, 7
      %v1950 = vsub.s32 0, %v1949
      %v1951 = vrot.slane %v1947, %v1950
      %v1952 = vadd.f32 %v1944, %v1951
      %v1953 = vadd.f32 %v1945, %v1951
      %v1954 = vadd.f32 %v1946, %v1951
      %v1955 = vtanh.pop %v1952
      %v1956 = vtanh.pop %v1953
      %v1957 = vtanh.pop %v1954
      %vm1958 = vcmp.ge.s32.totalorder %v508, 4
      %vm1959 = vcmp.ge.s32.totalorder %v509, 4
      %vm1960 = vcmp.ge.s32.totalorder %v510, 4
      %vm1961 = vmor %vm519, %vm1958
      %vm1962 = vmor %vm519, %vm1959
      %vm1963 = vmor %vm519, %vm1960
      %v1964 = vsel %vm1961, 1, 0
      %v1965 = vsel %vm1962, 1, 0
      %v1966 = vsel %vm1963, 1, 0
      %vm1967 = vcmp.eq.s32.totalorder %v1964, 1
      %vm1968 = vcmp.eq.s32.totalorder %v1965, 1
      %vm1969 = vcmp.eq.s32.totalorder %v1966, 1
      %v1970 = vsel %vm1967, %v1955, 0.0
      %v1971 = vsel %vm1968, %v1956, 0.0
      %v1972 = vsel %vm1969, %v1957, 0.0
      %v1973 = vpack.c.bf16 %v1971, %v1970
      %v1974 = vpack.c.bf16 %v1972, %v1972
      %v1977 = vunpack.c.l.b16 %v1973
      %v1978 = vunpack.c.h.b16 %v1973
      %v1979 = vunpack.c.l.b16 %v1974
      %v1980 = vpack.c.b16 %v1977, %v1977
      %v1981 = vpack.c.b16 %v1978, %v1978
      %v1982 = vpack.c.b16 %v1979, %v1979
      %1986 = vst.msk [vmem:[#allocation3] sm:$0xf] %vm552, %v1980
      %1987 = vst.msk [vmem:[#allocation3 + $0x4] sm:$0xf] %vm552, %v1981
      %1988 = vst.msk [vmem:[#allocation3 + $0x8] sm:$0x3] %vm1047, %v1982
      %v1989 = vld [vmem:[#allocation3] sm:$0xf]
      %v1990 = vld [vmem:[#allocation3 + $0x4] sm:$0xf]
      %v1991 = vld [vmem:[%s3] sm:$0xf]
      %v1992 = vld [vmem:[%s3 + $0x4] sm:$0xf]
      %v1993 = vld [vmem:[%s3 + $0x8] sm:$0xf]
      %v1994 = vld [vmem:[%s3 + $0xc] sm:$0xf]
      %v1995 = vld [vmem:[#allocation3 + $0x8] sm:$0x1]
      %s1996 = scalar_lea.vmem %s3, 16
      %v1997 = vld [vmem:[%s1996] sm:$0xf]
      %v1998 = vld [vmem:[%s1996 + $0x4] sm:$0xf]
      %v1999 = vld [vmem:[%s1996 + $0x8] sm:$0xf]
      %v2000 = vld [vmem:[%s1996 + $0xc] sm:$0xf]
      %v2004 = vunpack.c.l.b16 %v1989
      %v2005 = vunpack.c.l.b16 %v1990
      %v2006 = vunpack.c.l.b16 %v1995
      %v2007 = vpack.c.b16 %v2005, %v2004
      %v2008 = vpack.c.b16 %v2006, %v2006
      %v2010 = vshrl.u32 %v2007, 16
      %v2012 = vshll.u32 %v2007, 16
      %v2014 = vrot.slane %v2012, 1
      %v2015 = vor.u32 %v2010, %v2014
      %v2017 = vshll.u32 %v2008, 16
      %v2019 = vrot.slane %v2017, 1
      %v2020 = vsel %vm335, %v2015, %v2019
      %v2025 = vunpack.c.l.b16 %v1997
      %v2026 = vunpack.c.l.b16 %v1998
      %v2027 = vunpack.c.l.b16 %v1999
      %v2028 = vunpack.c.l.b16 %v2000
      %v2029 = vpack.c.b16 %v2026, %v2025
      %v2030 = vpack.c.b16 %v2028, %v2027
      %v2034 = vsel %vm413, %v2020, 0
      %2036 = vmatprep.subr.bf16.mxu0 0
      %2037 = vmatpush1.bf16.msra.mxu0 0
      %2038 = vmatprep.subr.bf16.mxu0 0
      %2039 = vmatpush1.bf16.msra.mxu0 0
      %2040 = vmatprep.subr.bf16.mxu0 0
      %2041 = vmatpush1.bf16.msra.mxu0 0
      %2042 = vmatprep.subr.bf16.mxu0 0
      %2043 = vmatpush1.bf16.msra.mxu0 0
      %2044 = vmatprep.subr.bf16.mxu0 0
      %2045 = vmatpush1.bf16.msra.mxu0 0
      %2046 = vmatprep.subr.bf16.mxu0 0
      %2047 = vmatpush1.bf16.msra.mxu0 0
      %2048 = vmatprep.subr.bf16.mxu0 0
      %2049 = vmatpush1.bf16.msra.mxu0 %v2030
      %2050 = vmatprep.subr.bf16.mxu0 0
      %2051 = vmatpush1.bf16.msra.mxu0 %v2029
      %2052 = vmatprep.subr.bf16.mxu0 0
      %2053 = vmatpush2.bf16.msra.mxu0 0
      %2054 = vmatprep.subr.bf16.mxu0 0
      %2055 = vmatpush2.bf16.msra.mxu0 0
      %2056 = vmatprep.subr.bf16.mxu0 0
      %2057 = vmatpush2.bf16.msra.mxu0 0
      %2058 = vmatprep.subr.bf16.mxu0 0
      %2059 = vmatpush2.bf16.msra.mxu0 0
      %2060 = vmatprep.subr.bf16.mxu0 0
      %2061 = vmatpush2.bf16.msra.mxu0 0
      %2062 = vmatprep.subr.bf16.mxu0 0
      %2063 = vmatpush2.bf16.msra.mxu0 0
      %2064 = vmatprep.subr.bf16.mxu0 0
      %2065 = vmatpush2.bf16.msra.mxu0 0
      %2066 = vmatprep.subr.bf16.mxu0 0
      %2067 = vmatpush2.bf16.msra.mxu0 0
      %2068 = vmatprep.mubr.bf16.mxu0 0
      %2069 = vmatmul.mubr.bf16.gmra.mxu0 %v2034
      %v2070 = vpop.f32.mrf.mxu0
      %v2071 = vadd.f32 0.0, %v2070
      %v2072 = vpop.f32.mrf.mxu0
      %v2073 = vpop.f32.mrf.mxu0
      %v2074 = vadd.f32 0.0, %v2073
      %v2075 = vpop.f32.mrf.mxu0
      %2076 = vdwg.mxu0
      %v2081 = vunpack.c.l.b16 %v1991
      %v2082 = vunpack.c.l.b16 %v1992
      %v2083 = vunpack.c.l.b16 %v1993
      %v2084 = vunpack.c.l.b16 %v1994
      %v2085 = vpack.c.b16 %v2082, %v2081
      %v2086 = vpack.c.b16 %v2084, %v2083
      %v2089 = vsel %vm413, %v2007, 0
      %2091 = vmatprep.subr.bf16.mxu0 0
      %2092 = vmatpush1.bf16.msra.mxu0 0
      %2093 = vmatprep.subr.bf16.mxu0 0
      %2094 = vmatpush1.bf16.msra.mxu0 0
      %2095 = vmatprep.subr.bf16.mxu0 0
      %2096 = vmatpush1.bf16.msra.mxu0 0
      %2097 = vmatprep.subr.bf16.mxu0 0
      %2098 = vmatpush1.bf16.msra.mxu0 0
      %2099 = vmatprep.subr.bf16.mxu0 0
      %2100 = vmatpush1.bf16.msra.mxu0 0
      %2101 = vmatprep.subr.bf16.mxu0 0
      %2102 = vmatpush1.bf16.msra.mxu0 0
      %2103 = vmatprep.subr.bf16.mxu0 0
      %2104 = vmatpush1.bf16.msra.mxu0 %v2086
      %2105 = vmatprep.subr.bf16.mxu0 0
      %2106 = vmatpush1.bf16.msra.mxu0 %v2085
      %2107 = vmatprep.subr.bf16.mxu0 0
      %2108 = vmatpush2.bf16.msra.mxu0 0
      %2109 = vmatprep.subr.bf16.mxu0 0
      %2110 = vmatpush2.bf16.msra.mxu0 0
      %2111 = vmatprep.subr.bf16.mxu0 0
      %2112 = vmatpush2.bf16.msra.mxu0 0
      %2113 = vmatprep.subr.bf16.mxu0 0
      %2114 = vmatpush2.bf16.msra.mxu0 0
      %2115 = vmatprep.subr.bf16.mxu0 0
      %2116 = vmatpush2.bf16.msra.mxu0 0
      %2117 = vmatprep.subr.bf16.mxu0 0
      %2118 = vmatpush2.bf16.msra.mxu0 0
      %2119 = vmatprep.subr.bf16.mxu0 0
      %2120 = vmatpush2.bf16.msra.mxu0 0
      %2121 = vmatprep.subr.bf16.mxu0 0
      %2122 = vmatpush2.bf16.msra.mxu0 0
      %2123 = vmatprep.mubr.bf16.mxu0 0
      %2124 = vmatmul.mubr.bf16.gmra.mxu0 %v2089
      %v2125 = vpop.f32.mrf.mxu0
      %v2126 = vadd.f32 %v2071, %v2125
      %v2127 = vpop.f32.mrf.mxu0
      %v2128 = vpop.f32.mrf.mxu0
      %v2129 = vadd.f32 %v2074, %v2128
      %v2130 = vpop.f32.mrf.mxu0
      %2131 = vdwg.mxu0
      %v2132 = vld [vmem:[#allocation3] sm:$0xe]
      %s2133 = scalar_lea.vmem %s3, 32
      %v2134 = vld [vmem:[%s2133] sm:$0xf]
      %v2135 = vld [vmem:[%s2133 + $0x4] sm:$0xf]
      %v2136 = vld [vmem:[%s2133 + $0x8] sm:$0xf]
      %v2137 = vld [vmem:[%s2133 + $0xc] sm:$0xf]
      %v2139 = vunpack.c.l.b16 %v2132
      %v2140 = vpack.c.b16 %v2005, %v2139
      %v2141 = vrot.slane %v2140, 1
      %v2142 = vrot.slane %v2008, 1
      %v2143 = vsel %vm360, %v2141, %v2142
      %v2148 = vunpack.c.l.b16 %v2134
      %v2149 = vunpack.c.l.b16 %v2135
      %v2150 = vunpack.c.l.b16 %v2136
      %v2151 = vunpack.c.l.b16 %v2137
      %v2152 = vpack.c.b16 %v2149, %v2148
      %v2153 = vpack.c.b16 %v2151, %v2150
      %v2157 = vsel %vm413, %v2143, 0
      %2159 = vmatprep.subr.bf16.mxu0 0
      %2160 = vmatpush1.bf16.msra.mxu0 0
      %2161 = vmatprep.subr.bf16.mxu0 0
      %2162 = vmatpush1.bf16.msra.mxu0 0
      %2163 = vmatprep.subr.bf16.mxu0 0
      %2164 = vmatpush1.bf16.msra.mxu0 0
      %2165 = vmatprep.subr.bf16.mxu0 0
      %2166 = vmatpush1.bf16.msra.mxu0 0
      %2167 = vmatprep.subr.bf16.mxu0 0
      %2168 = vmatpush1.bf16.msra.mxu0 0
      %2169 = vmatprep.subr.bf16.mxu0 0
      %2170 = vmatpush1.bf16.msra.mxu0 0
      %2171 = vmatprep.subr.bf16.mxu0 0
      %2172 = vmatpush1.bf16.msra.mxu0 %v2153
      %2173 = vmatprep.subr.bf16.mxu0 0
      %2174 = vmatpush1.bf16.msra.mxu0 %v2152
      %2175 = vmatprep.subr.bf16.mxu0 0
      %2176 = vmatpush2.bf16.msra.mxu0 0
      %2177 = vmatprep.subr.bf16.mxu0 0
      %2178 = vmatpush2.bf16.msra.mxu0 0
      %2179 = vmatprep.subr.bf16.mxu0 0
      %2180 = vmatpush2.bf16.msra.mxu0 0
      %2181 = vmatprep.subr.bf16.mxu0 0
      %2182 = vmatpush2.bf16.msra.mxu0 0
      %2183 = vmatprep.subr.bf16.mxu0 0
      %2184 = vmatpush2.bf16.msra.mxu0 0
      %2185 = vmatprep.subr.bf16.mxu0 0
      %2186 = vmatpush2.bf16.msra.mxu0 0
      %2187 = vmatprep.subr.bf16.mxu0 0
      %2188 = vmatpush2.bf16.msra.mxu0 0
      %2189 = vmatprep.subr.bf16.mxu0 0
      %2190 = vmatpush2.bf16.msra.mxu0 0
      %2191 = vmatprep.mubr.bf16.mxu0 0
      %2192 = vmatmul.mubr.bf16.gmra.mxu0 %v2157
      %v2193 = vpop.f32.mrf.mxu0
      %v2194 = vadd.f32 0.0, %v2193
      %v2195 = vpop.f32.mrf.mxu0
      %v2196 = vpop.f32.mrf.mxu0
      %v2197 = vadd.f32 0.0, %v2196
      %v2198 = vpop.f32.mrf.mxu0
      %2199 = vdwg.mxu0
      %v2200 = vadd.f32 %v2126, %v2194
      %v2201 = vadd.f32 %v2129, %v2197
      %v2202 = vld [vmem:[#allocation3 + $0x8] sm:$0x3]
      %s2203 = scalar_lea.vmem %s3, 48
      %v2204 = vld [vmem:[%s2203] sm:$0xf]
      %v2205 = vld [vmem:[%s2203 + $0x4] sm:$0xf]
      %v2206 = vld [vmem:[%s2203 + $0x8] sm:$0xf]
      %v2207 = vld [vmem:[%s2203 + $0xc] sm:$0xf]
      %v2209 = vunpack.c.l.b16 %v2202
      %v2210 = vpack.c.b16 %v2209, %v2209
      %v2212 = vshrl.u32 %v2140, 16
      %v2214 = vrot.slane %v2212, 1
      %v2215 = vshll.u32 %v2140, 16
      %v2217 = vrot.slane %v2215, 2
      %v2218 = vor.u32 %v2214, %v2217
      %v2220 = vshrl.u32 %v2210, 16
      %v2222 = vrot.slane %v2220, 1
      %v2223 = vshll.u32 %v2210, 16
      %v2225 = vrot.slane %v2223, 2
      %v2226 = vor.u32 %v2222, %v2225
      %v2227 = vsel %vm370, %v2218, %v2226
      %v2232 = vunpack.c.l.b16 %v2204
      %v2233 = vunpack.c.l.b16 %v2205
      %v2234 = vunpack.c.l.b16 %v2206
      %v2235 = vunpack.c.l.b16 %v2207
      %v2236 = vpack.c.b16 %v2233, %v2232
      %v2237 = vpack.c.b16 %v2235, %v2234
      %v2241 = vsel %vm413, %v2227, 0
      %2243 = vmatprep.subr.bf16.mxu0 0
      %2244 = vmatpush1.bf16.msra.mxu0 0
      %2245 = vmatprep.subr.bf16.mxu0 0
      %2246 = vmatpush1.bf16.msra.mxu0 0
      %2247 = vmatprep.subr.bf16.mxu0 0
      %2248 = vmatpush1.bf16.msra.mxu0 0
      %2249 = vmatprep.subr.bf16.mxu0 0
      %2250 = vmatpush1.bf16.msra.mxu0 0
      %2251 = vmatprep.subr.bf16.mxu0 0
      %2252 = vmatpush1.bf16.msra.mxu0 0
      %2253 = vmatprep.subr.bf16.mxu0 0
      %2254 = vmatpush1.bf16.msra.mxu0 0
      %2255 = vmatprep.subr.bf16.mxu0 0
      %2256 = vmatpush1.bf16.msra.mxu0 %v2237
      %2257 = vmatprep.subr.bf16.mxu0 0
      %2258 = vmatpush1.bf16.msra.mxu0 %v2236
      %2259 = vmatprep.subr.bf16.mxu0 0
      %2260 = vmatpush2.bf16.msra.mxu0 0
      %2261 = vmatprep.subr.bf16.mxu0 0
      %2262 = vmatpush2.bf16.msra.mxu0 0
      %2263 = vmatprep.subr.bf16.mxu0 0
      %2264 = vmatpush2.bf16.msra.mxu0 0
      %2265 = vmatprep.subr.bf16.mxu0 0
      %2266 = vmatpush2.bf16.msra.mxu0 0
      %2267 = vmatprep.subr.bf16.mxu0 0
      %2268 = vmatpush2.bf16.msra.mxu0 0
      %2269 = vmatprep.subr.bf16.mxu0 0
      %2270 = vmatpush2.bf16.msra.mxu0 0
      %2271 = vmatprep.subr.bf16.mxu0 0
      %2272 = vmatpush2.bf16.msra.mxu0 0
      %2273 = vmatprep.subr.bf16.mxu0 0
      %2274 = vmatpush2.bf16.msra.mxu0 0
      %2275 = vmatprep.mubr.bf16.mxu0 0
      %2276 = vmatmul.mubr.bf16.gmra.mxu0 %v2241
      %v2277 = vpop.f32.mrf.mxu0
      %v2278 = vadd.f32 0.0, %v2277
      %v2279 = vpop.f32.mrf.mxu0
      %v2280 = vpop.f32.mrf.mxu0
      %v2281 = vadd.f32 0.0, %v2280
      %v2282 = vpop.f32.mrf.mxu0
      %2283 = vdwg.mxu0
      %v2284 = vadd.f32 %v2200, %v2278
      %v2285 = vadd.f32 %v2201, %v2281
      %v2286 = vld [vmem:[#allocation3] sm:$0xc]
      %s2287 = scalar_lea.vmem %s3, 64
      %v2288 = vld [vmem:[%s2287] sm:$0xf]
      %v2289 = vld [vmem:[%s2287 + $0x4] sm:$0xf]
      %v2290 = vld [vmem:[%s2287 + $0x8] sm:$0xf]
      %v2291 = vld [vmem:[%s2287 + $0xc] sm:$0xf]
      %v2293 = vunpack.c.l.b16 %v2286
      %v2294 = vpack.c.b16 %v2005, %v2293
      %v2295 = vrot.slane %v2294, 2
      %v2296 = vrot.slane %v2210, 2
      %v2297 = vsel %vm388, %v2295, %v2296
      %v2302 = vunpack.c.l.b16 %v2288
      %v2303 = vunpack.c.l.b16 %v2289
      %v2304 = vunpack.c.l.b16 %v2290
      %v2305 = vunpack.c.l.b16 %v2291
      %v2306 = vpack.c.b16 %v2303, %v2302
      %v2307 = vpack.c.b16 %v2305, %v2304
      %v2311 = vsel %vm413, %v2297, 0
      %2313 = vmatprep.subr.bf16.mxu0 0
      %2314 = vmatpush1.bf16.msra.mxu0 0
      %2315 = vmatprep.subr.bf16.mxu0 0
      %2316 = vmatpush1.bf16.msra.mxu0 0
      %2317 = vmatprep.subr.bf16.mxu0 0
      %2318 = vmatpush1.bf16.msra.mxu0 0
      %2319 = vmatprep.subr.bf16.mxu0 0
      %2320 = vmatpush1.bf16.msra.mxu0 0
      %2321 = vmatprep.subr.bf16.mxu0 0
      %2322 = vmatpush1.bf16.msra.mxu0 0
      %2323 = vmatprep.subr.bf16.mxu0 0
      %2324 = vmatpush1.bf16.msra.mxu0 0
      %2325 = vmatprep.subr.bf16.mxu0 0
      %2326 = vmatpush1.bf16.msra.mxu0 %v2307
      %2327 = vmatprep.subr.bf16.mxu0 0
      %2328 = vmatpush1.bf16.msra.mxu0 %v2306
      %2329 = vmatprep.subr.bf16.mxu0 0
      %2330 = vmatpush2.bf16.msra.mxu0 0
      %2331 = vmatprep.subr.bf16.mxu0 0
      %2332 = vmatpush2.bf16.msra.mxu0 0
      %2333 = vmatprep.subr.bf16.mxu0 0
      %2334 = vmatpush2.bf16.msra.mxu0 0
      %2335 = vmatprep.subr.bf16.mxu0 0
      %2336 = vmatpush2.bf16.msra.mxu0 0
      %2337 = vmatprep.subr.bf16.mxu0 0
      %2338 = vmatpush2.bf16.msra.mxu0 0
      %2339 = vmatprep.subr.bf16.mxu0 0
      %2340 = vmatpush2.bf16.msra.mxu0 0
      %2341 = vmatprep.subr.bf16.mxu0 0
      %2342 = vmatpush2.bf16.msra.mxu0 0
      %2343 = vmatprep.subr.bf16.mxu0 0
      %2344 = vmatpush2.bf16.msra.mxu0 0
      %2345 = vmatprep.mubr.bf16.mxu0 0
      %2346 = vmatmul.mubr.bf16.gmra.mxu0 %v2311
      %v2347 = vpop.f32.mrf.mxu0
      %v2348 = vadd.f32 0.0, %v2347
      %v2349 = vpop.f32.mrf.mxu0
      %v2350 = vpop.f32.mrf.mxu0
      %v2351 = vadd.f32 0.0, %v2350
      %v2352 = vpop.f32.mrf.mxu0
      %2353 = vdwg.mxu0
      %v2354 = vadd.f32 %v2284, %v2348
      %v2355 = vadd.f32 %v2285, %v2351
      %v2356 = vld [vmem:[%s6] sm:$0x1]
      %v2358 = vlaneseq
      %v2359 = vshrl.u32 %v2358, 7
      %v2360 = vsub.s32 0, %v2359
      %v2361 = vrot.slane %v2356, %v2360
      %v2363 = vadd.f32 %v2354, %v2361
      %v2364 = vadd.f32 %v2355, %v2361
      %2365 = vst [vmem:[%s314] sm:$0xff] %v2363
      %2366 = vst [vmem:[%s314 + $0x8] sm:$0xff] %v2364
      %s2367 = smul.u32 2, %s23
      %p2368 = scmp.lt.s32.totalorder %s22, 1
      %s2369 = scalar_select %p2368, %s22, 1
      %p2370 = scmp.lt.s32.totalorder %s2367, 1
      %s2371 = scalar_select %p2370, %s2367, 1
      %s2372 = smul.addr %s2369, 2
      %s2373 = sadd.s32 %s2371, %s2372
      %s2374 = smul.addr %s2373, 8
      %s2375 = scalar_lea.vmem %s7, %s2374
      // Predicated region
      $region49: #{speech_postnet_forward.1} parent=47 // pred_check
        %p2376 = pneg %p204
      $region50: #{speech_postnet_forward.1} parent=47 // pred_check_branch
        %2378 = sbr.rel (%p2376) target = $region52
      $region51: #{speech_postnet_forward.1} parent=47 // pred_region
        %s2379 = smul.u32 2, %s23
      $region52: #{speech_postnet_forward.1} parent=47 // pred_fallthru
        _
    $region48: #{speech_postnet_forward.1} parent=5 // pred_fallthru
      _
    %p2380 = scmp.le.s32.totalorder 2, %s13
    // Predicated region
    $region53: #{speech_postnet_forward.1} parent=5 // pred_check
      %p2381 = pneg %p2380
    $region54: #{speech_postnet_forward.1} parent=5 // pred_check_branch
      %2383 = sbr.rel (%p2381) target = $region56
    $region55: #{speech_postnet_forward.1} parent=5 // pred_region
      %s2384 = ssub.s32 %s13, 2
      // Predicated region
      $region57: #{speech_postnet_forward.1} parent=55 // pred_check
        %p2385 = pneg %p210
      $region58: #{speech_postnet_forward.1} parent=55 // pred_check_branch
        %2387 = sbr.rel (%p2385) target = $region60
      $region59: #{speech_postnet_forward.1} parent=55 // pred_region
        %s2388 = smul.u32 2, %s25
        %p2389 = scmp.lt.s32.totalorder %s24, 1
        %s2390 = scalar_select %p2389, %s24, 1
        %p2391 = scmp.lt.s32.totalorder %s2388, 1
        %s2392 = scalar_select %p2391, %s2388, 1
        %s2393 = smul.addr %s2390, 2
        %s2394 = sadd.s32 %s2392, %s2393
        %s2395 = smul.addr %s2394, 8
        %s2396 = scalar_lea.vmem %s7, %s2395
      $region60: #{speech_postnet_forward.1} parent=55 // pred_fallthru
        _
    $region56: #{speech_postnet_forward.1} parent=5 // pred_fallthru
      _
  $region6: #{speech_postnet_forward.1} parent=0 // loop_footer
    %s17 = sadd.s32 1, %s13
  $region7: #{speech_postnet_forward.1} parent=0 // loop_footer_branch
    %12 = sbr.rel target = $region3
  $region8: #{speech_postnet_forward.1} parent=0 // loop_exit
    _

</llo_original>
